<compile_context>
chip_gen: v7x
topology: tpu7x:2x2x1
jax: 0.10.0
libtpu: 0.0.40
codegen_flags: <defaults>
</compile_context>

<pallas_src>
import functools
import math

import jax
import jax.numpy as jnp
from jax.experimental import pallas as pl
from jax.experimental.pallas import tpu as pltpu

_HALO_BLOCK = 128  # lane-aligned halo block width read from the neighbour tile


def windowed_se_block_1d(x, w1, b1, w2, b2, *, window_size=9, l_tile=None,
                         matmul_dtype=jnp.bfloat16):
    """WindowedSEBlock1d forward (max pooling, 'same' zero padding), native NCL.

    x:  (B, C, L)  PyTorch NCL layout.
    w1: (Cr, C)    = torch fc_conv[0].weight[:, :, 0]
    b1: (Cr,)
    w2: (C, Cr)    = torch fc_conv[2].weight[:, :, 0]
    b2: (C,)
    Returns (B, C, L) float32.
    """
    B, C, L = x.shape
    Cr = w1.shape[0]
    W = int(window_size)
    left = math.ceil((W - 1) / 2)
    right = (W - 1) // 2
    HP = _HALO_BLOCK

    # ---- pick the L tile -----------------------------------------------------
    if l_tile is not None:
        TL = int(l_tile)
    else:
        TL = L
        if L % 128 == 0 and L > 512:          # long sequences: tile the lane axis
            for cand in (512, 384, 256, 128):
                if L % cand == 0:
                    TL = cand
                    break
    tiled = TL != L
    if tiled:
        if TL % 128 != 0 or L % TL != 0:
            raise ValueError(f"l_tile={TL} must be a multiple of 128 dividing L={L}")
        if left > HP or right > HP:
            raise ValueError(f"window_size={W} halo exceeds {HP}-column halo block")
    NLT = L // TL
    Tb = TL // 128 if tiled else 0            # tile width in 128-lane blocks
    Lb = L // 128 if tiled else 0             # sequence length in 128-lane blocks

    xf = x.astype(jnp.float32)
    w1k = w1.astype(matmul_dtype)             # (Cr, C)
    w2k = w2.astype(matmul_dtype)             # (C, Cr)
    b1k = b1.reshape(Cr, 1).astype(jnp.float32)
    b2k = b2.reshape(C, 1).astype(jnp.float32)

    # ---- shared kernel pieces ------------------------------------------------
    def _doubling_max(ext):
        """ext: (C, S) -> (C, S-(W-1)); out[:, t] = max(ext[:, t:t+W]).

        Log-step doubling (shifts 1, 2, 4, ..., then the remainder); the shift
        axis is the lane axis, so each step is a lane rotate, not a sublane
        relayout.
        """
        m = ext
        p = 1
        while 2 * p <= W:
            n = m.shape[-1]
            m = jnp.maximum(m[:, :n - p], m[:, p:])
            p *= 2
        if p < W:
            s = W - p
            n = m.shape[-1]
            m = jnp.maximum(m[:, :n - s], m[:, s:])
        return m

    def _gate_and_store(xt, pooled, w1_ref, b1_ref, w2_ref, b2_ref, o_ref):
        # 1x1 conv -> SiLU -> 1x1 conv -> sigmoid, contracting over channels.
        h = jnp.dot(w1_ref[...], pooled.astype(w1_ref.dtype),
                    preferred_element_type=jnp.float32)            # (Cr, TL)
        h = h + b1_ref[...]
        h = h * jax.nn.sigmoid(h)                                  # SiLU (f32, EUP)
        z = jnp.dot(w2_ref[...], h.astype(w2_ref.dtype),
                    preferred_element_type=jnp.float32)            # (C, TL)
        gate = jax.nn.sigmoid(z + b2_ref[...])
        o_ref[...] = (xt * gate).astype(o_ref.dtype)               # gate the raw x

    def kernel_tiled(x_ref, xl_ref, xr_ref, w1_ref, b1_ref, w2_ref, b2_ref, o_ref):
        j = pl.program_id(1)
        xt = x_ref[...]                                            # (C, TL) f32
        pieces = []
        if left > 0:
            pieces.append(xl_ref[:, HP - left:])                   # (C, left)
        pieces.append(xt)
        if right > 0:
            pieces.append(xr_ref[:, :right])                       # (C, right)
        ext = jnp.concatenate(pieces, axis=-1) if len(pieces) > 1 else xt
        if left > 0 or right > 0:
            # Zero 'same' padding == F.pad: mask columns outside [0, L).  At the
            # sequence edges the (clamped) halo blocks carry interior data, which
            # this mask replaces with zeros.
            g0 = j * TL - left
            cols = g0 + jax.lax.broadcasted_iota(jnp.int32, (1, ext.shape[-1]), 1)
            ext = jnp.where((cols >= 0) & (cols < L), ext, 0.0)
        pooled = _doubling_max(ext)                                # (C, TL)
        _gate_and_store(xt, pooled, w1_ref, b1_ref, w2_ref, b2_ref, o_ref)

    def kernel_full(x_ref, w1_ref, b1_ref, w2_ref, b2_ref, o_ref):
        xt = x_ref[...]                                            # (C, L) f32
        pieces = []
        if left > 0:
            pieces.append(jnp.zeros((C, left), jnp.float32))
        pieces.append(xt)
        if right > 0:
            pieces.append(jnp.zeros((C, right), jnp.float32))
        ext = jnp.concatenate(pieces, axis=-1) if len(pieces) > 1 else xt
        pooled = _doubling_max(ext)                                # (C, L)
        _gate_and_store(xt, pooled, w1_ref, b1_ref, w2_ref, b2_ref, o_ref)

    # ---- specs ---------------------------------------------------------------
    x_spec = pl.BlockSpec((None, C, TL), lambda b, j: (b, 0, j))
    o_spec = pl.BlockSpec((None, C, TL), lambda b, j: (b, 0, j))
    w1_spec = pl.BlockSpec((Cr, C), lambda b, j: (0, 0))     # resident across grid
    b1_spec = pl.BlockSpec((Cr, 1), lambda b, j: (0, 0))
    w2_spec = pl.BlockSpec((C, Cr), lambda b, j: (0, 0))
    b2_spec = pl.BlockSpec((C, 1), lambda b, j: (0, 0))

    if tiled:
        # Previous / next 128-column block of x; index clamped at the edges
        # (the in-kernel mask zeroes whatever lands outside [0, L)).
        xl_spec = pl.BlockSpec(
            (None, C, HP), lambda b, j: (b, 0, jnp.maximum(j * Tb - 1, 0)))
        xr_spec = pl.BlockSpec(
            (None, C, HP), lambda b, j: (b, 0, jnp.minimum((j + 1) * Tb, Lb - 1)))
        in_specs = [x_spec, xl_spec, xr_spec, w1_spec, b1_spec, w2_spec, b2_spec]
        args = (xf, xf, xf, w1k, b1k, w2k, b2k)
        kernel = kernel_tiled
        halo_bytes = B * NLT * 2 * C * HP * 4
    else:
        in_specs = [x_spec, w1_spec, b1_spec, w2_spec, b2_spec]
        args = (xf, w1k, b1k, w2k, b2k)
        kernel = kernel_full
        halo_bytes = 0

    cost = pl.CostEstimate(
        flops=4 * B * C * Cr * L + 8 * B * C * L,          # 2 matmuls + pool/gate
        transcendentals=B * L * (C + Cr),                  # SiLU + sigmoid
        bytes_accessed=2 * B * C * L * 4 + halo_bytes + 4 * C * Cr + 4 * (C + Cr))

    out = pl.pallas_call(
        kernel,
        out_shape=jax.ShapeDtypeStruct((B, C, L), jnp.float32),
        grid=(B, NLT),
        in_specs=in_specs,
        out_specs=o_spec,
        compiler_params=pltpu.CompilerParams(
            dimension_semantics=("parallel", "parallel"),
            vmem_limit_bytes=32 * 1024 * 1024),
        cost_estimate=cost,
    )(*args)
    return out


def windowed_se_block_1d_reference(x, w1, b1, w2, b2, *, window_size=9):
    """Pure-JAX f32 reference mirroring the PyTorch module exactly (NCL)."""
    B, C, L = x.shape
    W = int(window_size)
    left = math.ceil((W - 1) / 2)
    right = (W - 1) // 2
    xf = x.astype(jnp.float32)
    xp = jnp.pad(xf, ((0, 0), (0, 0), (left, right)))              # zeros (F.pad)
    pooled = xp[:, :, 0:L]
    for k in range(1, W):
        pooled = jnp.maximum(pooled, xp[:, :, k:k + L])
    h = jnp.einsum('rc,bcl->brl', w1, pooled) + b1[None, :, None]
    h = h * jax.nn.sigmoid(h)
    gate = jax.nn.sigmoid(jnp.einsum('cr,brl->bcl', w2, h) + b2[None, :, None])
    return xf * gate


if __name__ == "__main__":
    B, C, L = 2, 128, 256           # small; L=256 lets us exercise L-tiling
    window, reduction = 9, 4        # module defaults: window_size=9
    Cr = C // reduction

    key = jax.random.PRNGKey(0)
    kx, k1, k2, k3, k4 = jax.random.split(key, 5)
    x = jax.random.normal(kx, (B, C, L), jnp.float32)
    lim1 = 1.0 / math.sqrt(C)
    lim2 = 1.0 / math.sqrt(Cr)
    w1 = jax.random.uniform(k1, (Cr, C), jnp.float32, -lim1, lim1)
    b1 = jax.random.uniform(k2, (Cr,), jnp.float32, -lim1, lim1)
    w2 = jax.random.uniform(k3, (C, Cr), jnp.float32, -lim2, lim2)
    b2 = jax.random.uniform(k4, (C,), jnp.float32, -lim2, lim2)

    # --- tiled path: grid (B, 2), 128-wide lane-aligned halo reads -----------
    fn_tiled = jax.jit(functools.partial(windowed_se_block_1d,
                                         window_size=window, l_tile=128))
    out = jax.block_until_ready(fn_tiled(x, w1, b1, w2, b2))
    ref = windowed_se_block_1d_reference(x, w1, b1, w2, b2, window_size=window)
    assert out.shape == (B, C, L), out.shape
    assert bool(jnp.all(jnp.isfinite(out)))
    err = float(jnp.max(jnp.abs(out - ref)))
    assert err < 3e-2, f"tiled path: max abs err vs reference = {err}"

    # --- untiled path (single L tile, L not a multiple of 128) ---------------
    x2 = x[:, :, :96]
    fn_full = jax.jit(functools.partial(windowed_se_block_1d, window_size=window))
    out2 = jax.block_until_ready(fn_full(x2, w1, b1, w2, b2))
    ref2 = windowed_se_block_1d_reference(x2, w1, b1, w2, b2, window_size=window)
    err2 = float(jnp.max(jnp.abs(out2 - ref2)))
    assert err2 < 3e-2, f"untiled path: max abs err vs reference = {err2}"

    print("KERNEL_OK")
</pallas_src>

<mosaic_0001>
module attributes {stable_mosaic.version = 11 : i64} {
  func.func @kernel_tiled(%arg0: i32, %arg1: i32, %arg2: memref<1x128x128xf32, #tpu.memory_space<vmem>>, %arg3: memref<1x128x128xf32, #tpu.memory_space<vmem>>, %arg4: memref<1x128x128xf32, #tpu.memory_space<vmem>>, %arg5: memref<32x128xbf16, #tpu.memory_space<vmem>>, %arg6: memref<32x1xf32, #tpu.memory_space<vmem>>, %arg7: memref<128x32xbf16, #tpu.memory_space<vmem>>, %arg8: memref<128x1xf32, #tpu.memory_space<vmem>>, %arg9: memref<1x128x128xf32, #tpu.memory_space<vmem>>) attributes {dimension_semantics = [#tpu.dimension_semantics<parallel>, #tpu.dimension_semantics<parallel>], iteration_bounds = array<i64: 2, 2>, scalar_prefetch = 0 : i64, scratch_operands = 0 : i64, tpu.core_type = #tpu.core_type<tc>, window_params = [{transform_indices = @transform_0, window_bounds = array<i64: 1, 128, 128>}, {transform_indices = @transform_1, window_bounds = array<i64: 1, 128, 128>}, {transform_indices = @transform_2, window_bounds = array<i64: 1, 128, 128>}, {pipeline_mode = #tpu.pipeline_mode<synchronous>, transform_indices = @transform_3, window_bounds = array<i64: 32, 128>}, {pipeline_mode = #tpu.pipeline_mode<synchronous>, transform_indices = @transform_4, window_bounds = array<i64: 32, 1>}, {pipeline_mode = #tpu.pipeline_mode<synchronous>, transform_indices = @transform_5, window_bounds = array<i64: 128, 32>}, {pipeline_mode = #tpu.pipeline_mode<synchronous>, transform_indices = @transform_6, window_bounds = array<i64: 128, 1>}, {transform_indices = @transform_7, window_bounds = array<i64: 1, 128, 128>}]} {
    %c0 = arith.constant 0 : index
    %c0_0 = arith.constant 0 : index
    %c0_1 = arith.constant 0 : index
    %0 = vector.load %arg2[%c0, %c0_0, %c0_1] : memref<1x128x128xf32, #tpu.memory_space<vmem>>, vector<1x128x128xf32>
    %1 = vector.shape_cast %0 : vector<1x128x128xf32> to vector<128x128xf32>
    %c0_2 = arith.constant 0 : index
    %c0_3 = arith.constant 0 : index
    %c124 = arith.constant 124 : index
    %2 = vector.load %arg3[%c0_2, %c0_3, %c124] : memref<1x128x128xf32, #tpu.memory_space<vmem>>, vector<1x128x4xf32>
    %3 = vector.shape_cast %2 : vector<1x128x4xf32> to vector<128x4xf32>
    %c0_4 = arith.constant 0 : index
    %c0_5 = arith.constant 0 : index
    %c0_6 = arith.constant 0 : index
    %4 = vector.load %arg4[%c0_4, %c0_5, %c0_6] : memref<1x128x128xf32, #tpu.memory_space<vmem>>, vector<1x128x4xf32>
    %5 = vector.shape_cast %4 : vector<1x128x4xf32> to vector<128x4xf32>
    %6 = tpu.concatenate %3, %1, %5 in 1 : vector<128x4xf32>, vector<128x128xf32>, vector<128x4xf32> -> vector<128x136xf32>
    %c128_i32 = arith.constant 128 : i32
    %7 = arith.muli %arg1, %c128_i32 : i32
    %c4_i32 = arith.constant 4 : i32
    %8 = arith.subi %7, %c4_i32 : i32
    %9 = tpu.iota {dimensions = array<i32: 1>} : vector<1x136xi32>
    %10 = vector.broadcast %8 : i32 to vector<1x136xi32>
    %11 = arith.addi %10, %9 : vector<1x136xi32>
    %c0_i32 = arith.constant 0 : i32
    %12 = vector.broadcast %c0_i32 : i32 to vector<1x136xi32>
    %13 = arith.cmpi sge, %11, %12 : vector<1x136xi32>
    %c256_i32 = arith.constant 256 : i32
    %14 = vector.broadcast %c256_i32 : i32 to vector<1x136xi32>
    %15 = arith.cmpi slt, %11, %14 : vector<1x136xi32>
    %16 = arith.andi %13, %15 : vector<1x136xi1>
    %cst = arith.constant 0.000000e+00 : f32
    %17 = vector.shape_cast %16 : vector<1x136xi1> to vector<1x136xi1>
    %18 = vector.broadcast %17 : vector<1x136xi1> to vector<128x136xi1>
    %19 = vector.broadcast %cst : f32 to vector<128x136xf32>
    %20 = arith.select %18, %6, %19 : vector<128x136xi1>, vector<128x136xf32>
    %21 = vector.extract_strided_slice %20 {offsets = [0, 0], sizes = [128, 135], strides = [1, 1]} : vector<128x136xf32> to vector<128x135xf32>
    %22 = vector.extract_strided_slice %20 {offsets = [0, 1], sizes = [128, 135], strides = [1, 1]} : vector<128x136xf32> to vector<128x135xf32>
    %23 = arith.maximumf %21, %22 : vector<128x135xf32>
    %24 = vector.extract_strided_slice %23 {offsets = [0, 0], sizes = [128, 133], strides = [1, 1]} : vector<128x135xf32> to vector<128x133xf32>
    %25 = vector.extract_strided_slice %23 {offsets = [0, 2], sizes = [128, 133], strides = [1, 1]} : vector<128x135xf32> to vector<128x133xf32>
    %26 = arith.maximumf %24, %25 : vector<128x133xf32>
    %27 = vector.extract_strided_slice %26 {offsets = [0, 0], sizes = [128, 129], strides = [1, 1]} : vector<128x133xf32> to vector<128x129xf32>
    %28 = vector.extract_strided_slice %26 {offsets = [0, 4], sizes = [128, 129], strides = [1, 1]} : vector<128x133xf32> to vector<128x129xf32>
    %29 = arith.maximumf %27, %28 : vector<128x129xf32>
    %30 = vector.extract_strided_slice %29 {offsets = [0, 0], sizes = [128, 128], strides = [1, 1]} : vector<128x129xf32> to vector<128x128xf32>
    %31 = vector.extract_strided_slice %29 {offsets = [0, 1], sizes = [128, 128], strides = [1, 1]} : vector<128x129xf32> to vector<128x128xf32>
    %32 = arith.maximumf %30, %31 : vector<128x128xf32>
    %c0_7 = arith.constant 0 : index
    %c0_8 = arith.constant 0 : index
    %33 = vector.load %arg5[%c0_7, %c0_8] : memref<32x128xbf16, #tpu.memory_space<vmem>>, vector<32x128xbf16>
    %34 = arith.truncf %32 : vector<128x128xf32> to vector<128x128xbf16>
    %cst_9 = arith.constant dense<0.000000e+00> : vector<32x128xf32>
    %35 = tpu.matmul %33, %34, %cst_9 {dimension_numbers = #tpu.dot_dimension_numbers<[1], [0], [0], [1], [0, 0, 1, 1], [], []>} : vector<32x128xbf16>, vector<128x128xbf16>, vector<32x128xf32> -> vector<32x128xf32>
    %c0_10 = arith.constant 0 : index
    %c0_11 = arith.constant 0 : index
    %36 = vector.load %arg6[%c0_10, %c0_11] : memref<32x1xf32, #tpu.memory_space<vmem>>, vector<32x1xf32>
    %37 = vector.broadcast %36 : vector<32x1xf32> to vector<32x128xf32>
    %38 = arith.addf %35, %37 : vector<32x128xf32>
    %39 = arith.negf %38 : vector<32x128xf32>
    %40 = math.exp %39 : vector<32x128xf32>
    %cst_12 = arith.constant 1.000000e+00 : f32
    %41 = vector.broadcast %cst_12 : f32 to vector<32x128xf32>
    %42 = arith.addf %41, %40 : vector<32x128xf32>
    %43 = arith.divf %41, %42 : vector<32x128xf32>
    %44 = arith.mulf %38, %43 : vector<32x128xf32>
    %c0_13 = arith.constant 0 : index
    %c0_14 = arith.constant 0 : index
    %45 = vector.load %arg7[%c0_13, %c0_14] : memref<128x32xbf16, #tpu.memory_space<vmem>>, vector<128x32xbf16>
    %46 = arith.truncf %44 : vector<32x128xf32> to vector<32x128xbf16>
    %cst_15 = arith.constant dense<0.000000e+00> : vector<128x128xf32>
    %47 = tpu.matmul %45, %46, %cst_15 {dimension_numbers = #tpu.dot_dimension_numbers<[1], [0], [0], [1], [0, 0, 1, 1], [], []>} : vector<128x32xbf16>, vector<32x128xbf16>, vector<128x128xf32> -> vector<128x128xf32>
    %c0_16 = arith.constant 0 : index
    %c0_17 = arith.constant 0 : index
    %48 = vector.load %arg8[%c0_16, %c0_17] : memref<128x1xf32, #tpu.memory_space<vmem>>, vector<128x1xf32>
    %49 = vector.broadcast %48 : vector<128x1xf32> to vector<128x128xf32>
    %50 = arith.addf %47, %49 : vector<128x128xf32>
    %51 = arith.negf %50 : vector<128x128xf32>
    %52 = math.exp %51 : vector<128x128xf32>
    %cst_18 = arith.constant 1.000000e+00 : f32
    %53 = vector.broadcast %cst_18 : f32 to vector<128x128xf32>
    %54 = arith.addf %53, %52 : vector<128x128xf32>
    %55 = arith.divf %53, %54 : vector<128x128xf32>
    %56 = arith.mulf %1, %55 : vector<128x128xf32>
    %c0_19 = arith.constant 0 : index
    %c0_20 = arith.constant 0 : index
    %c0_21 = arith.constant 0 : index
    %57 = vector.load %arg9[%c0_19, %c0_20, %c0_21] : memref<1x128x128xf32, #tpu.memory_space<vmem>>, vector<1x128x128xf32>
    %58 = vector.shape_cast %57 : vector<1x128x128xf32> to vector<128x128xf32>
    %59 = vector.shape_cast %56 : vector<128x128xf32> to vector<1x128x128xf32>
    tpu.vector_store %arg9[%c0_19, %c0_20, %c0_21], %59 {strides = array<i32>} : memref<1x128x128xf32, #tpu.memory_space<vmem>>, vector<1x128x128xf32>,
    return
  }
  func.func @transform_0(%arg0: i32, %arg1: i32) -> (i32, i32, i32) {
    %c0_i32 = arith.constant 0 : i32
    %c0_i32_0 = arith.constant 0 : i32
    return %arg0, %c0_i32, %arg1 : i32, i32, i32
  }
  func.func @transform_1(%arg0: i32, %arg1: i32) -> (i32, i32, i32) {
    %c1_i32 = arith.constant 1 : i32
    %0 = arith.muli %arg1, %c1_i32 : i32
    %c1_i32_0 = arith.constant 1 : i32
    %1 = arith.subi %0, %c1_i32_0 : i32
    %c0_i32 = arith.constant 0 : i32
    %2 = arith.maxsi %1, %c0_i32 : i32
    %c0_i32_1 = arith.constant 0 : i32
    %c0_i32_2 = arith.constant 0 : i32
    return %arg0, %c0_i32_1, %2 : i32, i32, i32
  }
  func.func @transform_2(%arg0: i32, %arg1: i32) -> (i32, i32, i32) {
    %c1_i32 = arith.constant 1 : i32
    %0 = arith.addi %arg1, %c1_i32 : i32
    %c1_i32_0 = arith.constant 1 : i32
    %1 = arith.muli %0, %c1_i32_0 : i32
    %c1_i32_1 = arith.constant 1 : i32
    %2 = arith.minsi %1, %c1_i32_1 : i32
    %c0_i32 = arith.constant 0 : i32
    %c0_i32_2 = arith.constant 0 : i32
    return %arg0, %c0_i32, %2 : i32, i32, i32
  }
  func.func @transform_3(%arg0: i32, %arg1: i32) -> (i32, i32) {
    %c0_i32 = arith.constant 0 : i32
    %c0_i32_0 = arith.constant 0 : i32
    %c0_i32_1 = arith.constant 0 : i32
    return %c0_i32, %c0_i32_0 : i32, i32
  }
  func.func @transform_4(%arg0: i32, %arg1: i32) -> (i32, i32) {
    %c0_i32 = arith.constant 0 : i32
    %c0_i32_0 = arith.constant 0 : i32
    %c0_i32_1 = arith.constant 0 : i32
    return %c0_i32, %c0_i32_0 : i32, i32
  }
  func.func @transform_5(%arg0: i32, %arg1: i32) -> (i32, i32) {
    %c0_i32 = arith.constant 0 : i32
    %c0_i32_0 = arith.constant 0 : i32
    %c0_i32_1 = arith.constant 0 : i32
    return %c0_i32, %c0_i32_0 : i32, i32
  }
  func.func @transform_6(%arg0: i32, %arg1: i32) -> (i32, i32) {
    %c0_i32 = arith.constant 0 : i32
    %c0_i32_0 = arith.constant 0 : i32
    %c0_i32_1 = arith.constant 0 : i32
    return %c0_i32, %c0_i32_0 : i32, i32
  }
  func.func @transform_7(%arg0: i32, %arg1: i32) -> (i32, i32, i32) {
    %c0_i32 = arith.constant 0 : i32
    %c0_i32_0 = arith.constant 0 : i32
    return %arg0, %c0_i32, %arg1 : i32, i32, i32
  }
}

</mosaic_0001>

<llo_original>
// kernel: windowed_se_block_1d.1
$region0: #{windowed_se_block_1d.1}
  #allocation0 [shape = 'u32[]', space=smem, size = 0x4, offset = 0x4, fixed_abs, tag = 'smem constant byte address 0x4 - core index']
  #allocation1 [shape = 'u32[144,128]{1,0:T(1,128)}', space=vmem, size = 0x12000, scoped, tag = 'internal scratch']
  %s0 = inlined_call_operand.hbm [shape: f32[2,128,256], index: 0, kind: input, shape index: {}, may-alias: {0,1,2}]
  %s1 = inlined_call_operand.hbm [shape: f32[2,128,256], index: 1, kind: input, shape index: {}, may-alias: {0,1,2}]
  %s2 = inlined_call_operand.hbm [shape: f32[2,128,256], index: 2, kind: input, shape index: {}, may-alias: {0,1,2}]
  %s3 = inlined_call_operand.vmem [shape: bf16[32,128], index: 3, kind: input, shape index: {}]
  %s4 = inlined_call_operand.vmem [shape: f32[32,1], index: 4, kind: input, shape index: {}]
  %s5 = inlined_call_operand.vmem [shape: bf16[128,32], index: 5, kind: input, shape index: {}]
  %s6 = inlined_call_operand.vmem [shape: f32[128,1], index: 6, kind: input, shape index: {}]
  %s7 = inlined_call_operand.hbm [shape: f32[2,128,256], index: 7, kind: output, shape index: {}]
  %s8 = sld [smem:[#allocation0]]
  $region73: #{windowed_se_block_1d.1} parent=0
    _
  %s10 = ssub.s32 1, %s8
  %s11 = scalar_select 0, %s10, %s8
  $region1: #{windowed_se_block_1d.1} parent=0
    #allocation2 [shape = 'u8[131072]{0}', space=vmem, size = 0x20000, scoped, tag = 'input window, operand 0']
    #allocation3 [shape = 's32[2]{0}', space=sflag, size = 0x8, scoped, tag = 'scoped memory for windowed_se_block_1d.1']
    #allocation4 [shape = 's32[2]{0}', space=sflag, size = 0x8, scoped, tag = 'scoped memory for windowed_se_block_1d.1']
    #allocation5 [shape = 'u8[131072]{0}', space=vmem, size = 0x20000, scoped, tag = 'input window, operand 1']
    #allocation6 [shape = 's32[2]{0}', space=sflag, size = 0x8, scoped, tag = 'scoped memory for windowed_se_block_1d.1']
    #allocation7 [shape = 'u8[131072]{0}', space=vmem, size = 0x20000, scoped, tag = 'input window, operand 2']
    #allocation8 [shape = 'u8[131072]{0}', space=vmem, size = 0x20000, scoped, tag = 'output window, operand 0']
    %12 = vsyncpa [#allocation3], 0
    %s13 = scalar_lea.sflag [#allocation3], 1
    %14 = vsyncpa %s13, 0
    %15 = vsyncpa [#allocation6], 0
    %s16 = scalar_lea.sflag [#allocation6], 1
    %17 = vsyncpa %s16, 0
    %18 = vsyncpa [#allocation4], 0
    %s19 = scalar_lea.sflag [#allocation4], 1
    %20 = vsyncpa %s19, 0
    loop: start=0, step=1, limit=6
    $region2: #{windowed_se_block_1d.1} parent=1 // loop_pre_header
      _
    $region3: #{windowed_se_block_1d.1} parent=1 // loop_header
      %s22 = sphi 0, %s26
      %p23 = scmp.ge.s32.totalorder %s22, 6
      %s29 = sphi 0, %s41
      %s30 = sphi 0, %s37
      %s31 = sphi 0, %s29
      %s32 = sphi 0, %s30
      %s33 = sphi 0, %s31
      %s34 = sphi 0, %s32
      %s46 = sphi 0, %s48
      %s49 = sphi 0, %s46
      %s50 = sphi 0, %s49
      %s66 = sphi 0, %s50
      %s80 = sphi 0, %s82
      %s83 = sphi 0, %s80
      %s84 = sphi 0, %s83
      %s100 = sphi 0, %s84
      %s114 = sphi 0, %s116
      %s117 = sphi 0, %s114
      %s118 = sphi 0, %s117
      %s134 = sphi 0, %s118
      %s138 = sphi 0, %s138
      %s140 = sphi 0, %s138
      %s141 = sphi 0, %s140
      %s155 = sphi 0, %s141
      %s159 = sphi 0, %s159
      %s161 = sphi 0, %s159
      %s162 = sphi 0, %s161
      %s176 = sphi 0, %s162
      %s180 = sphi 0, %s180
      %s182 = sphi 0, %s180
      %s183 = sphi 0, %s182
      %s197 = sphi 0, %s183
      %s201 = sphi 0, %s201
      %s203 = sphi 0, %s201
      %s204 = sphi 0, %s203
      %s218 = sphi 0, %s204
      %s226 = sphi 0, %s228
      %s229 = sphi 0, %s226
      %s230 = sphi 0, %s229
      %s246 = sphi 0, %s230
    $region4: #{windowed_se_block_1d.1} parent=1 // loop_header_branch
      %25 = sbr.rel (%p23) target = $region8
    $region5: #{windowed_se_block_1d.1} parent=1 // loop_body
      %s27 = ssub.s32 %s22, 1
      %s28 = ssub.s32 %s22, 2
      %s35 = sadd.s32 1, %s30
      %p36 = scmp.ge.s32.totalorder %s35, 2
      %s37 = scalar_select %p36, 0, %s35
      %s38 = sadd.s32 1, %s29
      %s39 = scalar_select %p36, %s38, %s29
      %p40 = scmp.ge.s32.totalorder %s39, 2
      %s41 = scalar_select %p40, 0, %s39
      %s42 = ssub.s32 %s29, %s41
      %s43 = ssub.s32 %s30, %s37
      %s44 = sor.u32 %s42, %s43
      %p45 = scmp.eq.s32.totalorder %s44, 0
      %s47 = sadd.s32 %s46, 1
      %s48 = scalar_select %p45, %s46, %s47
      %p51 = pneg %p45
      %p52 = scmp.eq.s32.totalorder %s22, 3
      %p53 = por %p51, %p52
      %p54 = scmp.ne.s32.totalorder %s46, %s49
      %p55 = scmp.eq.s32.totalorder %s22, 0
      %p56 = por %p54, %p55
      %p57 = scmp.ne.s32.totalorder %s46, %s49
      %p58 = scmp.eq.s32.totalorder %s27, 3
      %p59 = por %p57, %p58
      %p60 = scmp.ne.s32.totalorder %s49, %s50
      %p61 = scmp.eq.s32.totalorder %s27, 0
      %p62 = por %p60, %p61
      %p63 = scmp.ne.s32.totalorder %s49, %s50
      %p64 = scmp.eq.s32.totalorder %s28, 3
      %p65 = por %p63, %p64
      %p67 = scmp.ne.s32.totalorder %s50, %s66
      %p68 = scmp.eq.s32.totalorder %s28, 0
      %p69 = por %p67, %p68
      %s70 = ssub.s32 %s30, 1
      %p71 = scmp.gt.s32.totalorder %s70, 0
      %s72 = scalar_select %p71, %s70, 0
      %s73 = ssub.s32 %s37, 1
      %p74 = scmp.gt.s32.totalorder %s73, 0
      %s75 = scalar_select %p74, %s73, 0
      %s76 = ssub.s32 %s29, %s41
      %s77 = ssub.s32 %s72, %s75
      %s78 = sor.u32 %s76, %s77
      %p79 = scmp.eq.s32.totalorder %s78, 0
      %s81 = sadd.s32 %s80, 1
      %s82 = scalar_select %p79, %s80, %s81
      %p85 = pneg %p79
      %p86 = scmp.eq.s32.totalorder %s22, 3
      %p87 = por %p85, %p86
      %p88 = scmp.ne.s32.totalorder %s80, %s83
      %p89 = scmp.eq.s32.totalorder %s22, 0
      %p90 = por %p88, %p89
      %p91 = scmp.ne.s32.totalorder %s80, %s83
      %p92 = scmp.eq.s32.totalorder %s27, 3
      %p93 = por %p91, %p92
      %p94 = scmp.ne.s32.totalorder %s83, %s84
      %p95 = scmp.eq.s32.totalorder %s27, 0
      %p96 = por %p94, %p95
      %p97 = scmp.ne.s32.totalorder %s83, %s84
      %p98 = scmp.eq.s32.totalorder %s28, 3
      %p99 = por %p97, %p98
      %p101 = scmp.ne.s32.totalorder %s84, %s100
      %p102 = scmp.eq.s32.totalorder %s28, 0
      %p103 = por %p101, %p102
      %s104 = sadd.s32 %s30, 1
      %p105 = scmp.lt.s32.totalorder %s104, 1
      %s106 = scalar_select %p105, %s104, 1
      %s107 = sadd.s32 %s37, 1
      %p108 = scmp.lt.s32.totalorder %s107, 1
      %s109 = scalar_select %p108, %s107, 1
      %s110 = ssub.s32 %s29, %s41
      %s111 = ssub.s32 %s106, %s109
      %s112 = sor.u32 %s110, %s111
      %p113 = scmp.eq.s32.totalorder %s112, 0
      %s115 = sadd.s32 %s114, 1
      %s116 = scalar_select %p113, %s114, %s115
      %p119 = pneg %p113
      %p120 = scmp.eq.s32.totalorder %s22, 3
      %p121 = por %p119, %p120
      %p122 = scmp.ne.s32.totalorder %s114, %s117
      %p123 = scmp.eq.s32.totalorder %s22, 0
      %p124 = por %p122, %p123
      %p125 = scmp.ne.s32.totalorder %s114, %s117
      %p126 = scmp.eq.s32.totalorder %s27, 3
      %p127 = por %p125, %p126
      %p128 = scmp.ne.s32.totalorder %s117, %s118
      %p129 = scmp.eq.s32.totalorder %s27, 0
      %p130 = por %p128, %p129
      %p131 = scmp.ne.s32.totalorder %s117, %s118
      %p132 = scmp.eq.s32.totalorder %s28, 3
      %p133 = por %p131, %p132
      %p135 = scmp.ne.s32.totalorder %s118, %s134
      %p136 = scmp.eq.s32.totalorder %s28, 0
      %p137 = por %p135, %p136
      %s139 = sadd.s32 %s138, 1
      %p142 = scmp.eq.s32.totalorder %s22, 3
      %p143 = scmp.ne.s32.totalorder %s138, %s140
      %p144 = scmp.eq.s32.totalorder %s22, 0
      %p145 = por %p143, %p144
      %p146 = scmp.ne.s32.totalorder %s138, %s140
      %p147 = scmp.eq.s32.totalorder %s27, 3
      %p148 = por %p146, %p147
      %p149 = scmp.ne.s32.totalorder %s140, %s141
      %p150 = scmp.eq.s32.totalorder %s27, 0
      %p151 = por %p149, %p150
      %p152 = scmp.ne.s32.totalorder %s140, %s141
      %p153 = scmp.eq.s32.totalorder %s28, 3
      %p154 = por %p152, %p153
      %p156 = scmp.ne.s32.totalorder %s141, %s155
      %p157 = scmp.eq.s32.totalorder %s28, 0
      %p158 = por %p156, %p157
      %s160 = sadd.s32 %s159, 1
      %p163 = scmp.eq.s32.totalorder %s22, 3
      %p164 = scmp.ne.s32.totalorder %s159, %s161
      %p165 = scmp.eq.s32.totalorder %s22, 0
      %p166 = por %p164, %p165
      %p167 = scmp.ne.s32.totalorder %s159, %s161
      %p168 = scmp.eq.s32.totalorder %s27, 3
      %p169 = por %p167, %p168
      %p170 = scmp.ne.s32.totalorder %s161, %s162
      %p171 = scmp.eq.s32.totalorder %s27, 0
      %p172 = por %p170, %p171
      %p173 = scmp.ne.s32.totalorder %s161, %s162
      %p174 = scmp.eq.s32.totalorder %s28, 3
      %p175 = por %p173, %p174
      %p177 = scmp.ne.s32.totalorder %s162, %s176
      %p178 = scmp.eq.s32.totalorder %s28, 0
      %p179 = por %p177, %p178
      %s181 = sadd.s32 %s180, 1
      %p184 = scmp.eq.s32.totalorder %s22, 3
      %p185 = scmp.ne.s32.totalorder %s180, %s182
      %p186 = scmp.eq.s32.totalorder %s22, 0
      %p187 = por %p185, %p186
      %p188 = scmp.ne.s32.totalorder %s180, %s182
      %p189 = scmp.eq.s32.totalorder %s27, 3
      %p190 = por %p188, %p189
      %p191 = scmp.ne.s32.totalorder %s182, %s183
      %p192 = scmp.eq.s32.totalorder %s27, 0
      %p193 = por %p191, %p192
      %p194 = scmp.ne.s32.totalorder %s182, %s183
      %p195 = scmp.eq.s32.totalorder %s28, 3
      %p196 = por %p194, %p195
      %p198 = scmp.ne.s32.totalorder %s183, %s197
      %p199 = scmp.eq.s32.totalorder %s28, 0
      %p200 = por %p198, %p199
      %s202 = sadd.s32 %s201, 1
      %p205 = scmp.eq.s32.totalorder %s22, 3
      %p206 = scmp.ne.s32.totalorder %s201, %s203
      %p207 = scmp.eq.s32.totalorder %s22, 0
      %p208 = por %p206, %p207
      %p209 = scmp.ne.s32.totalorder %s201, %s203
      %p210 = scmp.eq.s32.totalorder %s27, 3
      %p211 = por %p209, %p210
      %p212 = scmp.ne.s32.totalorder %s203, %s204
      %p213 = scmp.eq.s32.totalorder %s27, 0
      %p214 = por %p212, %p213
      %p215 = scmp.ne.s32.totalorder %s203, %s204
      %p216 = scmp.eq.s32.totalorder %s28, 3
      %p217 = por %p215, %p216
      %p219 = scmp.ne.s32.totalorder %s204, %s218
      %p220 = scmp.eq.s32.totalorder %s28, 0
      %p221 = por %p219, %p220
      %s222 = ssub.s32 %s29, %s41
      %s223 = ssub.s32 %s30, %s37
      %s224 = sor.u32 %s222, %s223
      %p225 = scmp.eq.s32.totalorder %s224, 0
      %s227 = sadd.s32 %s226, 1
      %s228 = scalar_select %p225, %s226, %s227
      %p231 = pneg %p225
      %p232 = scmp.eq.s32.totalorder %s22, 3
      %p233 = por %p231, %p232
      %p234 = scmp.ne.s32.totalorder %s226, %s229
      %p235 = scmp.eq.s32.totalorder %s22, 0
      %p236 = por %p234, %p235
      %p237 = scmp.ne.s32.totalorder %s226, %s229
      %p238 = scmp.eq.s32.totalorder %s27, 3
      %p239 = por %p237, %p238
      %p240 = scmp.ne.s32.totalorder %s229, %s230
      %p241 = scmp.eq.s32.totalorder %s27, 0
      %p242 = por %p240, %p241
      %p243 = scmp.ne.s32.totalorder %s229, %s230
      %p244 = scmp.eq.s32.totalorder %s28, 3
      %p245 = por %p243, %p244
      %p247 = scmp.ne.s32.totalorder %s230, %s246
      %p248 = scmp.eq.s32.totalorder %s28, 0
      %p249 = por %p247, %p248
      %p250 = scmp.le.s32.totalorder 1, %s22
      %p251 = scmp.lt.s32.totalorder %s22, 5
      %p252 = pnand %p250, %p251
      %p253 = pneg %p252
      // Predicated region
      $region9: #{windowed_se_block_1d.1} parent=5 // pred_check
        _
      $region10: #{windowed_se_block_1d.1} parent=5 // pred_check_branch
        %255 = sbr.rel (%p252) target = $region12
      $region11: #{windowed_se_block_1d.1} parent=5 // pred_region
        %s256 = ssub.s32 %s22, 1
        // Predicated region
        $region13: #{windowed_se_block_1d.1} parent=11 // pred_check
          %p257 = pneg %p151
        $region14: #{windowed_se_block_1d.1} parent=11 // pred_check_branch
          %259 = sbr.rel (%p257) target = $region16
        $region15: #{windowed_se_block_1d.1} parent=11 // pred_region
          _
        $region16: #{windowed_se_block_1d.1} parent=11 // pred_fallthru
          _
        // Predicated region
        $region17: #{windowed_se_block_1d.1} parent=11 // pred_check
          %p260 = pneg %p172
        $region18: #{windowed_se_block_1d.1} parent=11 // pred_check_branch
          %262 = sbr.rel (%p260) target = $region20
        $region19: #{windowed_se_block_1d.1} parent=11 // pred_region
          _
        $region20: #{windowed_se_block_1d.1} parent=11 // pred_fallthru
          _
        // Predicated region
        $region21: #{windowed_se_block_1d.1} parent=11 // pred_check
          %p263 = pneg %p193
        $region22: #{windowed_se_block_1d.1} parent=11 // pred_check_branch
          %265 = sbr.rel (%p263) target = $region24
        $region23: #{windowed_se_block_1d.1} parent=11 // pred_region
          _
        $region24: #{windowed_se_block_1d.1} parent=11 // pred_fallthru
          _
        // Predicated region
        $region25: #{windowed_se_block_1d.1} parent=11 // pred_check
          %p266 = pneg %p214
        $region26: #{windowed_se_block_1d.1} parent=11 // pred_check_branch
          %268 = sbr.rel (%p266) target = $region28
        $region27: #{windowed_se_block_1d.1} parent=11 // pred_region
          _
        $region28: #{windowed_se_block_1d.1} parent=11 // pred_fallthru
          _
      $region12: #{windowed_se_block_1d.1} parent=5 // pred_fallthru
        _
      %p269 = scmp.lt.s32.totalorder %s22, 4
      // Predicated region
      $region29: #{windowed_se_block_1d.1} parent=5 // pred_check
        %p270 = pneg %p269
      $region30: #{windowed_se_block_1d.1} parent=5 // pred_check_branch
        %272 = sbr.rel (%p270) target = $region32
      $region31: #{windowed_se_block_1d.1} parent=5 // pred_region
        // Predicated region
        $region33: #{windowed_se_block_1d.1} parent=31 // pred_check
          %p273 = pneg %p56
        $region34: #{windowed_se_block_1d.1} parent=31 // pred_check_branch
          %275 = sbr.rel (%p273) target = $region36
        $region35: #{windowed_se_block_1d.1} parent=31 // pred_region
          %s276 = sand.u32 %s46, 1
          %s277 = scalar_lea.sflag [#allocation3], %s276
          %s278 = sand.u32 %s46, 1
          %s279 = smul.addr %s278, 128
          %s280 = scalar_lea.vmem [#allocation2], %s279
          %s282 = ssub.s32 2048, 2048
          %283 = vsyncadd %s277, %s282
          %s284 = smul.addr %s29, 32
          %s285 = sadd.s32 %s30, %s284
          %s286 = smul.addr %s285, 128
          %s287 = scalar_lea.hbm %s0, %s286
          %s288 = sshll.u32 %s280, 4
          %s289 = int_to_ptr.vmem [resolvable:$true] %s288
          %294 = dma.hbm_to_vmem [thread:$0]  %s287, 2048, %s289, %s277, 256, 128, 8
        $region36: #{windowed_se_block_1d.1} parent=31 // pred_fallthru
          _
        // Predicated region
        $region37: #{windowed_se_block_1d.1} parent=31 // pred_check
          %p295 = pneg %p90
        $region38: #{windowed_se_block_1d.1} parent=31 // pred_check_branch
          %297 = sbr.rel (%p295) target = $region40
        $region39: #{windowed_se_block_1d.1} parent=31 // pred_region
          %s298 = sand.u32 %s22, 1
          %s299 = scalar_lea.sflag [#allocation6], %s298
          %s300 = sand.u32 %s80, 1
          %s301 = smul.addr %s300, 128
          %s302 = scalar_lea.vmem [#allocation5], %s301
          %s303 = ssub.s32 %s30, 1
          %p304 = scmp.gt.s32.totalorder %s303, 0
          %s305 = scalar_select %p304, %s303, 0
          %s307 = ssub.s32 2048, 2048
          %308 = vsyncadd %s299, %s307
          %s309 = smul.addr %s29, 32
          %s310 = sadd.s32 %s305, %s309
          %s311 = smul.addr %s310, 128
          %s312 = scalar_lea.hbm %s1, %s311
          %s313 = sshll.u32 %s302, 4
          %s314 = int_to_ptr.vmem [resolvable:$true] %s313
          %319 = dma.hbm_to_vmem [thread:$0]  %s312, 2048, %s314, %s299, 256, 128, 8
        $region40: #{windowed_se_block_1d.1} parent=31 // pred_fallthru
          _
        // Predicated region
        $region41: #{windowed_se_block_1d.1} parent=31 // pred_check
          %p320 = pneg %p124
        $region42: #{windowed_se_block_1d.1} parent=31 // pred_check_branch
          %322 = sbr.rel (%p320) target = $region44
        $region43: #{windowed_se_block_1d.1} parent=31 // pred_region
          %s323 = sand.u32 %s22, 1
          %s324 = scalar_lea.sflag [#allocation6], %s323
          %s325 = sand.u32 %s114, 1
          %s326 = smul.addr %s325, 128
          %s327 = scalar_lea.vmem [#allocation7], %s326
          %s328 = sadd.s32 %s30, 1
          %p329 = scmp.lt.s32.totalorder %s328, 1
          %s330 = scalar_select %p329, %s328, 1
          %s332 = ssub.s32 2048, 2048
          %333 = vsyncadd %s324, %s332
          %s334 = smul.addr %s29, 32
          %s335 = sadd.s32 %s330, %s334
          %s336 = smul.addr %s335, 128
          %s337 = scalar_lea.hbm %s2, %s336
          %s338 = sshll.u32 %s327, 4
          %s339 = int_to_ptr.vmem [resolvable:$true] %s338
          %344 = dma.hbm_to_vmem [thread:$0]  %s337, 2048, %s339, %s324, 256, 128, 8
        $region44: #{windowed_se_block_1d.1} parent=31 // pred_fallthru
          _
      $region32: #{windowed_se_block_1d.1} parent=5 // pred_fallthru
        _
      %p345 = scmp.le.s32.totalorder 1, %s22
      %p346 = scmp.lt.s32.totalorder %s22, 5
      %p347 = pnand %p345, %p346
      %p348 = pneg %p347
      // Predicated region
      $region45: #{windowed_se_block_1d.1} parent=5 // pred_check
        _
      $region46: #{windowed_se_block_1d.1} parent=5 // pred_check_branch
        %350 = sbr.rel (%p347) target = $region48
      $region47: #{windowed_se_block_1d.1} parent=5 // pred_region
        %s351 = ssub.s32 %s22, 1
        %s352 = sand.u32 %s49, 1
        %s353 = scalar_lea.sflag [#allocation3], %s352
        %s354 = sand.u32 %s49, 1
        %s355 = smul.addr %s354, 128
        %s356 = scalar_lea.vmem [#allocation2], %s355
        // Predicated region
        $region49: #{windowed_se_block_1d.1} parent=47 // pred_check
          %p357 = pneg %p62
        $region50: #{windowed_se_block_1d.1} parent=47 // pred_check_branch
          %359 = sbr.rel (%p357) target = $region52
        $region51: #{windowed_se_block_1d.1} parent=47 // pred_region
          %360 = dma.done %s353, 2048
        $region52: #{windowed_se_block_1d.1} parent=47 // pred_fallthru
          _
        %s361 = sand.u32 %s27, 1
        %s362 = scalar_lea.sflag [#allocation6], %s361
        %s363 = sand.u32 %s83, 1
        %s364 = smul.addr %s363, 128
        %s365 = scalar_lea.vmem [#allocation5], %s364
        // Predicated region
        $region53: #{windowed_se_block_1d.1} parent=47 // pred_check
          %p366 = pneg %p96
        $region54: #{windowed_se_block_1d.1} parent=47 // pred_check_branch
          %368 = sbr.rel (%p366) target = $region56
        $region55: #{windowed_se_block_1d.1} parent=47 // pred_region
          %369 = dma.done %s362, 2048
        $region56: #{windowed_se_block_1d.1} parent=47 // pred_fallthru
          _
        %s370 = sand.u32 %s27, 1
        %s371 = scalar_lea.sflag [#allocation6], %s370
        %s372 = sand.u32 %s117, 1
        %s373 = smul.addr %s372, 128
        %s374 = scalar_lea.vmem [#allocation7], %s373
        // Predicated region
        $region57: #{windowed_se_block_1d.1} parent=47 // pred_check
          %p375 = pneg %p130
        $region58: #{windowed_se_block_1d.1} parent=47 // pred_check_branch
          %377 = sbr.rel (%p375) target = $region60
        $region59: #{windowed_se_block_1d.1} parent=47 // pred_region
          %378 = dma.done %s371, 2048
        $region60: #{windowed_se_block_1d.1} parent=47 // pred_fallthru
          _
        %s379 = sand.u32 %s49, 1
        %s380 = scalar_lea.sflag [#allocation3], %s379
        %s381 = sand.u32 %s49, 1
        %s382 = smul.addr %s381, 128
        %s383 = scalar_lea.vmem [#allocation2], %s382
        %p384 = pneg %p62
        %p385 = pneg %p59
        %s386 = sand.u32 %s27, 1
        %s387 = scalar_lea.sflag [#allocation6], %s386
        %s388 = sand.u32 %s83, 1
        %s389 = smul.addr %s388, 128
        %s390 = scalar_lea.vmem [#allocation5], %s389
        %p391 = pneg %p96
        %p392 = pneg %p93
        %s393 = sand.u32 %s27, 1
        %s394 = scalar_lea.sflag [#allocation6], %s393
        %s395 = sand.u32 %s117, 1
        %s396 = smul.addr %s395, 128
        %s397 = scalar_lea.vmem [#allocation7], %s396
        %p398 = pneg %p130
        %p399 = pneg %p127
        %p400 = pneg %p151
        %p401 = pneg %p148
        %p402 = pneg %p172
        %p403 = pneg %p169
        %p404 = pneg %p193
        %p405 = pneg %p190
        %p406 = pneg %p214
        %p407 = pneg %p211
        %p408 = pneg %p242
        %p409 = pneg %p239
        %s410 = sand.u32 %s229, 1
        %s411 = scalar_lea.sflag [#allocation4], %s410
        %s412 = sand.u32 %s229, 1
        %s413 = smul.addr %s412, 128
        %s414 = scalar_lea.vmem [#allocation8], %s413
        %s415 = ssub.s32 %s32, 1
        %p416 = scmp.gt.s32.totalorder %s415, 0
        %s417 = scalar_select %p416, %s415, 0
        %s418 = sadd.s32 %s32, 1
        %p419 = scmp.lt.s32.totalorder %s418, 1
        %s420 = scalar_select %p419, %s418, 1
        %v422 = vld [vmem:[%s356] sm:$0xff]
        %v423 = vld [vmem:[%s356 + $0x8] sm:$0xff]
        %v424 = vld [vmem:[%s356 + $0x10] sm:$0xff]
        %v425 = vld [vmem:[%s356 + $0x18] sm:$0xff]
        %v426 = vld [vmem:[%s356 + $0x20] sm:$0xff]
        %v427 = vld [vmem:[%s356 + $0x28] sm:$0xff]
        %v428 = vld [vmem:[%s356 + $0x30] sm:$0xff]
        %v429 = vld [vmem:[%s356 + $0x38] sm:$0xff]
        %v430 = vld [vmem:[%s356 + $0x40] sm:$0xff]
        %v431 = vld [vmem:[%s356 + $0x48] sm:$0xff]
        %v432 = vld [vmem:[%s356 + $0x50] sm:$0xff]
        %v433 = vld [vmem:[%s356 + $0x58] sm:$0xff]
        %v434 = vld [vmem:[%s356 + $0x60] sm:$0xff]
        %v435 = vld [vmem:[%s356 + $0x68] sm:$0xff]
        %v436 = vld [vmem:[%s356 + $0x70] sm:$0xff]
        %v437 = vld [vmem:[%s356 + $0x78] sm:$0xff]
        %v438 = vld [vmem:[%s365] sm:$0xff]
        %v439 = vld [vmem:[%s365 + $0x8] sm:$0xff]
        %v440 = vld [vmem:[%s365 + $0x10] sm:$0xff]
        %v441 = vld [vmem:[%s365 + $0x18] sm:$0xff]
        %v442 = vld [vmem:[%s365 + $0x20] sm:$0xff]
        %v443 = vld [vmem:[%s365 + $0x28] sm:$0xff]
        %v444 = vld [vmem:[%s365 + $0x30] sm:$0xff]
        %v445 = vld [vmem:[%s365 + $0x38] sm:$0xff]
        %v446 = vld [vmem:[%s365 + $0x40] sm:$0xff]
        %v447 = vld [vmem:[%s365 + $0x48] sm:$0xff]
        %v448 = vld [vmem:[%s365 + $0x50] sm:$0xff]
        %v449 = vld [vmem:[%s365 + $0x58] sm:$0xff]
        %v450 = vld [vmem:[%s365 + $0x60] sm:$0xff]
        %v451 = vld [vmem:[%s365 + $0x68] sm:$0xff]
        %v452 = vld [vmem:[%s365 + $0x70] sm:$0xff]
        %v453 = vld [vmem:[%s365 + $0x78] sm:$0xff]
        %v454 = vld [vmem:[%s374] sm:$0xff]
        %v455 = vld [vmem:[%s374 + $0x8] sm:$0xff]
        %v456 = vld [vmem:[%s374 + $0x10] sm:$0xff]
        %v457 = vld [vmem:[%s374 + $0x18] sm:$0xff]
        %v458 = vld [vmem:[%s374 + $0x20] sm:$0xff]
        %v459 = vld [vmem:[%s374 + $0x28] sm:$0xff]
        %v460 = vld [vmem:[%s374 + $0x30] sm:$0xff]
        %v461 = vld [vmem:[%s374 + $0x38] sm:$0xff]
        %v462 = vld [vmem:[%s374 + $0x40] sm:$0xff]
        %v463 = vld [vmem:[%s374 + $0x48] sm:$0xff]
        %v464 = vld [vmem:[%s374 + $0x50] sm:$0xff]
        %v465 = vld [vmem:[%s374 + $0x58] sm:$0xff]
        %v466 = vld [vmem:[%s374 + $0x60] sm:$0xff]
        %v467 = vld [vmem:[%s374 + $0x68] sm:$0xff]
        %v468 = vld [vmem:[%s374 + $0x70] sm:$0xff]
        %v469 = vld [vmem:[%s374 + $0x78] sm:$0xff]
        %486 = vrot.lane.b32.xlu0 %v438, 4
        %v487 = vpop.permute.xlu0 %486
        %488 = vrot.lane.b32.xlu0 %v439, 4
        %v489 = vpop.permute.xlu0 %488
        %490 = vrot.lane.b32.xlu0 %v440, 4
        %v491 = vpop.permute.xlu0 %490
        %492 = vrot.lane.b32.xlu0 %v441, 4
        %v493 = vpop.permute.xlu0 %492
        %494 = vrot.lane.b32.xlu0 %v442, 4
        %v495 = vpop.permute.xlu0 %494
        %496 = vrot.lane.b32.xlu0 %v443, 4
        %v497 = vpop.permute.xlu0 %496
        %498 = vrot.lane.b32.xlu0 %v444, 4
        %v499 = vpop.permute.xlu0 %498
        %500 = vrot.lane.b32.xlu0 %v445, 4
        %v501 = vpop.permute.xlu0 %500
        %502 = vrot.lane.b32.xlu0 %v446, 4
        %v503 = vpop.permute.xlu0 %502
        %504 = vrot.lane.b32.xlu0 %v447, 4
        %v505 = vpop.permute.xlu0 %504
        %506 = vrot.lane.b32.xlu0 %v448, 4
        %v507 = vpop.permute.xlu0 %506
        %508 = vrot.lane.b32.xlu0 %v449, 4
        %v509 = vpop.permute.xlu0 %508
        %510 = vrot.lane.b32.xlu0 %v450, 4
        %v511 = vpop.permute.xlu0 %510
        %512 = vrot.lane.b32.xlu0 %v451, 4
        %v513 = vpop.permute.xlu0 %512
        %514 = vrot.lane.b32.xlu0 %v452, 4
        %v515 = vpop.permute.xlu0 %514
        %516 = vrot.lane.b32.xlu0 %v453, 4
        %v517 = vpop.permute.xlu0 %516
        %550 = vrot.lane.b32.xlu0 %v422, 4
        %v551 = vpop.permute.xlu0 %550
        %552 = vrot.lane.b32.xlu0 %v423, 4
        %v553 = vpop.permute.xlu0 %552
        %554 = vrot.lane.b32.xlu0 %v424, 4
        %v555 = vpop.permute.xlu0 %554
        %556 = vrot.lane.b32.xlu0 %v425, 4
        %v557 = vpop.permute.xlu0 %556
        %558 = vrot.lane.b32.xlu0 %v426, 4
        %v559 = vpop.permute.xlu0 %558
        %560 = vrot.lane.b32.xlu0 %v427, 4
        %v561 = vpop.permute.xlu0 %560
        %562 = vrot.lane.b32.xlu0 %v428, 4
        %v563 = vpop.permute.xlu0 %562
        %564 = vrot.lane.b32.xlu0 %v429, 4
        %v565 = vpop.permute.xlu0 %564
        %566 = vrot.lane.b32.xlu0 %v430, 4
        %v567 = vpop.permute.xlu0 %566
        %568 = vrot.lane.b32.xlu0 %v431, 4
        %v569 = vpop.permute.xlu0 %568
        %570 = vrot.lane.b32.xlu0 %v432, 4
        %v571 = vpop.permute.xlu0 %570
        %572 = vrot.lane.b32.xlu0 %v433, 4
        %v573 = vpop.permute.xlu0 %572
        %574 = vrot.lane.b32.xlu0 %v434, 4
        %v575 = vpop.permute.xlu0 %574
        %576 = vrot.lane.b32.xlu0 %v435, 4
        %v577 = vpop.permute.xlu0 %576
        %578 = vrot.lane.b32.xlu0 %v436, 4
        %v579 = vpop.permute.xlu0 %578
        %580 = vrot.lane.b32.xlu0 %v437, 4
        %v581 = vpop.permute.xlu0 %580
        %614 = vrot.lane.b32.xlu0 %v454, 4
        %v615 = vpop.permute.xlu0 %614
        %616 = vrot.lane.b32.xlu0 %v455, 4
        %v617 = vpop.permute.xlu0 %616
        %618 = vrot.lane.b32.xlu0 %v456, 4
        %v619 = vpop.permute.xlu0 %618
        %620 = vrot.lane.b32.xlu0 %v457, 4
        %v621 = vpop.permute.xlu0 %620
        %622 = vrot.lane.b32.xlu0 %v458, 4
        %v623 = vpop.permute.xlu0 %622
        %624 = vrot.lane.b32.xlu0 %v459, 4
        %v625 = vpop.permute.xlu0 %624
        %626 = vrot.lane.b32.xlu0 %v460, 4
        %v627 = vpop.permute.xlu0 %626
        %628 = vrot.lane.b32.xlu0 %v461, 4
        %v629 = vpop.permute.xlu0 %628
        %630 = vrot.lane.b32.xlu0 %v462, 4
        %v631 = vpop.permute.xlu0 %630
        %632 = vrot.lane.b32.xlu0 %v463, 4
        %v633 = vpop.permute.xlu0 %632
        %634 = vrot.lane.b32.xlu0 %v464, 4
        %v635 = vpop.permute.xlu0 %634
        %636 = vrot.lane.b32.xlu0 %v465, 4
        %v637 = vpop.permute.xlu0 %636
        %638 = vrot.lane.b32.xlu0 %v466, 4
        %v639 = vpop.permute.xlu0 %638
        %640 = vrot.lane.b32.xlu0 %v467, 4
        %v641 = vpop.permute.xlu0 %640
        %642 = vrot.lane.b32.xlu0 %v468, 4
        %v643 = vpop.permute.xlu0 %642
        %644 = vrot.lane.b32.xlu0 %v469, 4
        %v645 = vpop.permute.xlu0 %644
        %vm662 = vcmask 31744
        %v663 = vsel %vm662, %v487, %v551
        %v664 = vsel %vm662, %v489, %v553
        %v665 = vsel %vm662, %v491, %v555
        %v666 = vsel %vm662, %v493, %v557
        %v667 = vsel %vm662, %v495, %v559
        %v668 = vsel %vm662, %v497, %v561
        %v669 = vsel %vm662, %v499, %v563
        %v670 = vsel %vm662, %v501, %v565
        %v671 = vsel %vm662, %v503, %v567
        %v672 = vsel %vm662, %v505, %v569
        %v673 = vsel %vm662, %v507, %v571
        %v674 = vsel %vm662, %v509, %v573
        %v675 = vsel %vm662, %v511, %v575
        %v676 = vsel %vm662, %v513, %v577
        %v677 = vsel %vm662, %v515, %v579
        %v678 = vsel %vm662, %v517, %v581
        %v679 = vsel %vm662, %v551, %v615
        %v680 = vsel %vm662, %v553, %v617
        %v681 = vsel %vm662, %v555, %v619
        %v682 = vsel %vm662, %v557, %v621
        %v683 = vsel %vm662, %v559, %v623
        %v684 = vsel %vm662, %v561, %v625
        %v685 = vsel %vm662, %v563, %v627
        %v686 = vsel %vm662, %v565, %v629
        %v687 = vsel %vm662, %v567, %v631
        %v688 = vsel %vm662, %v569, %v633
        %v689 = vsel %vm662, %v571, %v635
        %v690 = vsel %vm662, %v573, %v637
        %v691 = vsel %vm662, %v575, %v639
        %v692 = vsel %vm662, %v577, %v641
        %v693 = vsel %vm662, %v579, %v643
        %v694 = vsel %vm662, %v581, %v645
        %s695 = smul.u32 %s32, 128
        %s696 = ssub.s32 %s695, 4
        %v697 = vlaneseq
        %v698 = vand.u32 %v697, 127
        %v699 = vadd.s32 %v698, 128
        %v700 = vstv %s696
        %v701 = vadd.s32 %v700, %v698
        %v702 = vadd.s32 %v700, %v699
        %vm703 = vcmp.ge.s32.totalorder %v701, 0
        %vm704 = vcmp.ge.s32.totalorder %v702, 0
        %vm705 = vcmp.lt.s32.totalorder %v701, 256
        %vm706 = vcmp.lt.s32.totalorder %v702, 256
        %vm707 = vmand %vm703, %vm705
        %vm708 = vmand %vm704, %vm706
        %v709 = vsel %vm707, 1, 0
        %v710 = vsel %vm708, 1, 0
        %vm711 = vcmp.eq.s32.totalorder %v709, 1
        %vm712 = vcmp.eq.s32.totalorder %v710, 1
        %v713 = vsel %vm711, %v663, 0.0
        %v714 = vsel %vm712, %v679, 0.0
        %v715 = vsel %vm711, %v664, 0.0
        %v716 = vsel %vm712, %v680, 0.0
        %v717 = vsel %vm711, %v665, 0.0
        %v718 = vsel %vm712, %v681, 0.0
        %v719 = vsel %vm711, %v666, 0.0
        %v720 = vsel %vm712, %v682, 0.0
        %v721 = vsel %vm711, %v667, 0.0
        %v722 = vsel %vm712, %v683, 0.0
        %v723 = vsel %vm711, %v668, 0.0
        %v724 = vsel %vm712, %v684, 0.0
        %v725 = vsel %vm711, %v669, 0.0
        %v726 = vsel %vm712, %v685, 0.0
        %v727 = vsel %vm711, %v670, 0.0
        %v728 = vsel %vm712, %v686, 0.0
        %v729 = vsel %vm711, %v671, 0.0
        %v730 = vsel %vm712, %v687, 0.0
        %v731 = vsel %vm711, %v672, 0.0
        %v732 = vsel %vm712, %v688, 0.0
        %v733 = vsel %vm711, %v673, 0.0
        %v734 = vsel %vm712, %v689, 0.0
        %v735 = vsel %vm711, %v674, 0.0
        %v736 = vsel %vm712, %v690, 0.0
        %v737 = vsel %vm711, %v675, 0.0
        %v738 = vsel %vm712, %v691, 0.0
        %v739 = vsel %vm711, %v676, 0.0
        %v740 = vsel %vm712, %v692, 0.0
        %v741 = vsel %vm711, %v677, 0.0
        %v742 = vsel %vm712, %v693, 0.0
        %v743 = vsel %vm711, %v678, 0.0
        %v744 = vsel %vm712, %v694, 0.0
        %777 = vrot.lane.b32.xlu0 %v713, 127
        %v778 = vpop.permute.xlu0 %777
        %779 = vrot.lane.b32.xlu0 %v714, 127
        %v780 = vpop.permute.xlu0 %779
        %781 = vrot.lane.b32.xlu0 %v715, 127
        %v782 = vpop.permute.xlu0 %781
        %783 = vrot.lane.b32.xlu0 %v716, 127
        %v784 = vpop.permute.xlu0 %783
        %785 = vrot.lane.b32.xlu0 %v717, 127
        %v786 = vpop.permute.xlu0 %785
        %787 = vrot.lane.b32.xlu0 %v718, 127
        %v788 = vpop.permute.xlu0 %787
        %789 = vrot.lane.b32.xlu0 %v719, 127
        %v790 = vpop.permute.xlu0 %789
        %791 = vrot.lane.b32.xlu0 %v720, 127
        %v792 = vpop.permute.xlu0 %791
        %793 = vrot.lane.b32.xlu0 %v721, 127
        %v794 = vpop.permute.xlu0 %793
        %795 = vrot.lane.b32.xlu0 %v722, 127
        %v796 = vpop.permute.xlu0 %795
        %797 = vrot.lane.b32.xlu0 %v723, 127
        %v798 = vpop.permute.xlu0 %797
        %799 = vrot.lane.b32.xlu0 %v724, 127
        %v800 = vpop.permute.xlu0 %799
        %801 = vrot.lane.b32.xlu0 %v725, 127
        %v802 = vpop.permute.xlu0 %801
        %803 = vrot.lane.b32.xlu0 %v726, 127
        %v804 = vpop.permute.xlu0 %803
        %805 = vrot.lane.b32.xlu0 %v727, 127
        %v806 = vpop.permute.xlu0 %805
        %807 = vrot.lane.b32.xlu0 %v728, 127
        %v808 = vpop.permute.xlu0 %807
        %809 = vrot.lane.b32.xlu0 %v729, 127
        %v810 = vpop.permute.xlu0 %809
        %811 = vrot.lane.b32.xlu0 %v730, 127
        %v812 = vpop.permute.xlu0 %811
        %813 = vrot.lane.b32.xlu0 %v731, 127
        %v814 = vpop.permute.xlu0 %813
        %815 = vrot.lane.b32.xlu0 %v732, 127
        %v816 = vpop.permute.xlu0 %815
        %817 = vrot.lane.b32.xlu0 %v733, 127
        %v818 = vpop.permute.xlu0 %817
        %819 = vrot.lane.b32.xlu0 %v734, 127
        %v820 = vpop.permute.xlu0 %819
        %821 = vrot.lane.b32.xlu0 %v735, 127
        %v822 = vpop.permute.xlu0 %821
        %823 = vrot.lane.b32.xlu0 %v736, 127
        %v824 = vpop.permute.xlu0 %823
        %825 = vrot.lane.b32.xlu0 %v737, 127
        %v826 = vpop.permute.xlu0 %825
        %827 = vrot.lane.b32.xlu0 %v738, 127
        %v828 = vpop.permute.xlu0 %827
        %829 = vrot.lane.b32.xlu0 %v739, 127
        %v830 = vpop.permute.xlu0 %829
        %831 = vrot.lane.b32.xlu0 %v740, 127
        %v832 = vpop.permute.xlu0 %831
        %833 = vrot.lane.b32.xlu0 %v741, 127
        %v834 = vpop.permute.xlu0 %833
        %835 = vrot.lane.b32.xlu0 %v742, 127
        %v836 = vpop.permute.xlu0 %835
        %837 = vrot.lane.b32.xlu0 %v743, 127
        %v838 = vpop.permute.xlu0 %837
        %839 = vrot.lane.b32.xlu0 %v744, 127
        %v840 = vpop.permute.xlu0 %839
        %vm841 = vcmask 1039360
        %v842 = vsel %vm841, %v778, %v780
        %v843 = vsel %vm841, %v782, %v784
        %v844 = vsel %vm841, %v786, %v788
        %v845 = vsel %vm841, %v790, %v792
        %v846 = vsel %vm841, %v794, %v796
        %v847 = vsel %vm841, %v798, %v800
        %v848 = vsel %vm841, %v802, %v804
        %v849 = vsel %vm841, %v806, %v808
        %v850 = vsel %vm841, %v810, %v812
        %v851 = vsel %vm841, %v814, %v816
        %v852 = vsel %vm841, %v818, %v820
        %v853 = vsel %vm841, %v822, %v824
        %v854 = vsel %vm841, %v826, %v828
        %v855 = vsel %vm841, %v830, %v832
        %v856 = vsel %vm841, %v834, %v836
        %v857 = vsel %vm841, %v838, %v840
        %v890 = vmax.f32 %v713, %v842
        %v891 = vmax.f32 %v714, %v780
        %v892 = vmax.f32 %v715, %v843
        %v893 = vmax.f32 %v716, %v784
        %v894 = vmax.f32 %v717, %v844
        %v895 = vmax.f32 %v718, %v788
        %v896 = vmax.f32 %v719, %v845
        %v897 = vmax.f32 %v720, %v792
        %v898 = vmax.f32 %v721, %v846
        %v899 = vmax.f32 %v722, %v796
        %v900 = vmax.f32 %v723, %v847
        %v901 = vmax.f32 %v724, %v800
        %v902 = vmax.f32 %v725, %v848
        %v903 = vmax.f32 %v726, %v804
        %v904 = vmax.f32 %v727, %v849
        %v905 = vmax.f32 %v728, %v808
        %v906 = vmax.f32 %v729, %v850
        %v907 = vmax.f32 %v730, %v812
        %v908 = vmax.f32 %v731, %v851
        %v909 = vmax.f32 %v732, %v816
        %v910 = vmax.f32 %v733, %v852
        %v911 = vmax.f32 %v734, %v820
        %v912 = vmax.f32 %v735, %v853
        %v913 = vmax.f32 %v736, %v824
        %v914 = vmax.f32 %v737, %v854
        %v915 = vmax.f32 %v738, %v828
        %v916 = vmax.f32 %v739, %v855
        %v917 = vmax.f32 %v740, %v832
        %v918 = vmax.f32 %v741, %v856
        %v919 = vmax.f32 %v742, %v836
        %v920 = vmax.f32 %v743, %v857
        %v921 = vmax.f32 %v744, %v840
        %954 = vrot.lane.b32.xlu0 %v890, 126
        %v955 = vpop.permute.xlu0 %954
        %956 = vrot.lane.b32.xlu0 %v891, 126
        %v957 = vpop.permute.xlu0 %956
        %958 = vrot.lane.b32.xlu0 %v892, 126
        %v959 = vpop.permute.xlu0 %958
        %960 = vrot.lane.b32.xlu0 %v893, 126
        %v961 = vpop.permute.xlu0 %960
        %962 = vrot.lane.b32.xlu0 %v894, 126
        %v963 = vpop.permute.xlu0 %962
        %964 = vrot.lane.b32.xlu0 %v895, 126
        %v965 = vpop.permute.xlu0 %964
        %966 = vrot.lane.b32.xlu0 %v896, 126
        %v967 = vpop.permute.xlu0 %966
        %968 = vrot.lane.b32.xlu0 %v897, 126
        %v969 = vpop.permute.xlu0 %968
        %970 = vrot.lane.b32.xlu0 %v898, 126
        %v971 = vpop.permute.xlu0 %970
        %972 = vrot.lane.b32.xlu0 %v899, 126
        %v973 = vpop.permute.xlu0 %972
        %974 = vrot.lane.b32.xlu0 %v900, 126
        %v975 = vpop.permute.xlu0 %974
        %976 = vrot.lane.b32.xlu0 %v901, 126
        %v977 = vpop.permute.xlu0 %976
        %978 = vrot.lane.b32.xlu0 %v902, 126
        %v979 = vpop.permute.xlu0 %978
        %980 = vrot.lane.b32.xlu0 %v903, 126
        %v981 = vpop.permute.xlu0 %980
        %982 = vrot.lane.b32.xlu0 %v904, 126
        %v983 = vpop.permute.xlu0 %982
        %984 = vrot.lane.b32.xlu0 %v905, 126
        %v985 = vpop.permute.xlu0 %984
        %986 = vrot.lane.b32.xlu0 %v906, 126
        %v987 = vpop.permute.xlu0 %986
        %988 = vrot.lane.b32.xlu0 %v907, 126
        %v989 = vpop.permute.xlu0 %988
        %990 = vrot.lane.b32.xlu0 %v908, 126
        %v991 = vpop.permute.xlu0 %990
        %992 = vrot.lane.b32.xlu0 %v909, 126
        %v993 = vpop.permute.xlu0 %992
        %994 = vrot.lane.b32.xlu0 %v910, 126
        %v995 = vpop.permute.xlu0 %994
        %996 = vrot.lane.b32.xlu0 %v911, 126
        %v997 = vpop.permute.xlu0 %996
        %998 = vrot.lane.b32.xlu0 %v912, 126
        %v999 = vpop.permute.xlu0 %998
        %1000 = vrot.lane.b32.xlu0 %v913, 126
        %v1001 = vpop.permute.xlu0 %1000
        %1002 = vrot.lane.b32.xlu0 %v914, 126
        %v1003 = vpop.permute.xlu0 %1002
        %1004 = vrot.lane.b32.xlu0 %v915, 126
        %v1005 = vpop.permute.xlu0 %1004
        %1006 = vrot.lane.b32.xlu0 %v916, 126
        %v1007 = vpop.permute.xlu0 %1006
        %1008 = vrot.lane.b32.xlu0 %v917, 126
        %v1009 = vpop.permute.xlu0 %1008
        %1010 = vrot.lane.b32.xlu0 %v918, 126
        %v1011 = vpop.permute.xlu0 %1010
        %1012 = vrot.lane.b32.xlu0 %v919, 126
        %v1013 = vpop.permute.xlu0 %1012
        %1014 = vrot.lane.b32.xlu0 %v920, 126
        %v1015 = vpop.permute.xlu0 %1014
        %1016 = vrot.lane.b32.xlu0 %v921, 126
        %v1017 = vpop.permute.xlu0 %1016
        %vm1018 = vcmask 1031168
        %v1019 = vsel %vm1018, %v955, %v957
        %v1020 = vsel %vm1018, %v959, %v961
        %v1021 = vsel %vm1018, %v963, %v965
        %v1022 = vsel %vm1018, %v967, %v969
        %v1023 = vsel %vm1018, %v971, %v973
        %v1024 = vsel %vm1018, %v975, %v977
        %v1025 = vsel %vm1018, %v979, %v981
        %v1026 = vsel %vm1018, %v983, %v985
        %v1027 = vsel %vm1018, %v987, %v989
        %v1028 = vsel %vm1018, %v991, %v993
        %v1029 = vsel %vm1018, %v995, %v997
        %v1030 = vsel %vm1018, %v999, %v1001
        %v1031 = vsel %vm1018, %v1003, %v1005
        %v1032 = vsel %vm1018, %v1007, %v1009
        %v1033 = vsel %vm1018, %v1011, %v1013
        %v1034 = vsel %vm1018, %v1015, %v1017
        %v1067 = vmax.f32 %v890, %v1019
        %v1068 = vmax.f32 %v891, %v957
        %v1069 = vmax.f32 %v892, %v1020
        %v1070 = vmax.f32 %v893, %v961
        %v1071 = vmax.f32 %v894, %v1021
        %v1072 = vmax.f32 %v895, %v965
        %v1073 = vmax.f32 %v896, %v1022
        %v1074 = vmax.f32 %v897, %v969
        %v1075 = vmax.f32 %v898, %v1023
        %v1076 = vmax.f32 %v899, %v973
        %v1077 = vmax.f32 %v900, %v1024
        %v1078 = vmax.f32 %v901, %v977
        %v1079 = vmax.f32 %v902, %v1025
        %v1080 = vmax.f32 %v903, %v981
        %v1081 = vmax.f32 %v904, %v1026
        %v1082 = vmax.f32 %v905, %v985
        %v1083 = vmax.f32 %v906, %v1027
        %v1084 = vmax.f32 %v907, %v989
        %v1085 = vmax.f32 %v908, %v1028
        %v1086 = vmax.f32 %v909, %v993
        %v1087 = vmax.f32 %v910, %v1029
        %v1088 = vmax.f32 %v911, %v997
        %v1089 = vmax.f32 %v912, %v1030
        %v1090 = vmax.f32 %v913, %v1001
        %v1091 = vmax.f32 %v914, %v1031
        %v1092 = vmax.f32 %v915, %v1005
        %v1093 = vmax.f32 %v916, %v1032
        %v1094 = vmax.f32 %v917, %v1009
        %v1095 = vmax.f32 %v918, %v1033
        %v1096 = vmax.f32 %v919, %v1013
        %v1097 = vmax.f32 %v920, %v1034
        %v1098 = vmax.f32 %v921, %v1017
        %1131 = vrot.lane.b32.xlu0 %v1067, 124
        %v1132 = vpop.permute.xlu0 %1131
        %1133 = vrot.lane.b32.xlu0 %v1068, 124
        %v1134 = vpop.permute.xlu0 %1133
        %1135 = vrot.lane.b32.xlu0 %v1069, 124
        %v1136 = vpop.permute.xlu0 %1135
        %1137 = vrot.lane.b32.xlu0 %v1070, 124
        %v1138 = vpop.permute.xlu0 %1137
        %1139 = vrot.lane.b32.xlu0 %v1071, 124
        %v1140 = vpop.permute.xlu0 %1139
        %1141 = vrot.lane.b32.xlu0 %v1072, 124
        %v1142 = vpop.permute.xlu0 %1141
        %1143 = vrot.lane.b32.xlu0 %v1073, 124
        %v1144 = vpop.permute.xlu0 %1143
        %1145 = vrot.lane.b32.xlu0 %v1074, 124
        %v1146 = vpop.permute.xlu0 %1145
        %1147 = vrot.lane.b32.xlu0 %v1075, 124
        %v1148 = vpop.permute.xlu0 %1147
        %1149 = vrot.lane.b32.xlu0 %v1076, 124
        %v1150 = vpop.permute.xlu0 %1149
        %1151 = vrot.lane.b32.xlu0 %v1077, 124
        %v1152 = vpop.permute.xlu0 %1151
        %1153 = vrot.lane.b32.xlu0 %v1078, 124
        %v1154 = vpop.permute.xlu0 %1153
        %1155 = vrot.lane.b32.xlu0 %v1079, 124
        %v1156 = vpop.permute.xlu0 %1155
        %1157 = vrot.lane.b32.xlu0 %v1080, 124
        %v1158 = vpop.permute.xlu0 %1157
        %1159 = vrot.lane.b32.xlu0 %v1081, 124
        %v1160 = vpop.permute.xlu0 %1159
        %1161 = vrot.lane.b32.xlu0 %v1082, 124
        %v1162 = vpop.permute.xlu0 %1161
        %1163 = vrot.lane.b32.xlu0 %v1083, 124
        %v1164 = vpop.permute.xlu0 %1163
        %1165 = vrot.lane.b32.xlu0 %v1084, 124
        %v1166 = vpop.permute.xlu0 %1165
        %1167 = vrot.lane.b32.xlu0 %v1085, 124
        %v1168 = vpop.permute.xlu0 %1167
        %1169 = vrot.lane.b32.xlu0 %v1086, 124
        %v1170 = vpop.permute.xlu0 %1169
        %1171 = vrot.lane.b32.xlu0 %v1087, 124
        %v1172 = vpop.permute.xlu0 %1171
        %1173 = vrot.lane.b32.xlu0 %v1088, 124
        %v1174 = vpop.permute.xlu0 %1173
        %1175 = vrot.lane.b32.xlu0 %v1089, 124
        %v1176 = vpop.permute.xlu0 %1175
        %1177 = vrot.lane.b32.xlu0 %v1090, 124
        %v1178 = vpop.permute.xlu0 %1177
        %1179 = vrot.lane.b32.xlu0 %v1091, 124
        %v1180 = vpop.permute.xlu0 %1179
        %1181 = vrot.lane.b32.xlu0 %v1092, 124
        %v1182 = vpop.permute.xlu0 %1181
        %1183 = vrot.lane.b32.xlu0 %v1093, 124
        %v1184 = vpop.permute.xlu0 %1183
        %1185 = vrot.lane.b32.xlu0 %v1094, 124
        %v1186 = vpop.permute.xlu0 %1185
        %1187 = vrot.lane.b32.xlu0 %v1095, 124
        %v1188 = vpop.permute.xlu0 %1187
        %1189 = vrot.lane.b32.xlu0 %v1096, 124
        %v1190 = vpop.permute.xlu0 %1189
        %1191 = vrot.lane.b32.xlu0 %v1097, 124
        %v1192 = vpop.permute.xlu0 %1191
        %1193 = vrot.lane.b32.xlu0 %v1098, 124
        %v1194 = vpop.permute.xlu0 %1193
        %vm1195 = vcmask 1014784
        %v1196 = vsel %vm1195, %v1132, %v1134
        %v1197 = vsel %vm1195, %v1136, %v1138
        %v1198 = vsel %vm1195, %v1140, %v1142
        %v1199 = vsel %vm1195, %v1144, %v1146
        %v1200 = vsel %vm1195, %v1148, %v1150
        %v1201 = vsel %vm1195, %v1152, %v1154
        %v1202 = vsel %vm1195, %v1156, %v1158
        %v1203 = vsel %vm1195, %v1160, %v1162
        %v1204 = vsel %vm1195, %v1164, %v1166
        %v1205 = vsel %vm1195, %v1168, %v1170
        %v1206 = vsel %vm1195, %v1172, %v1174
        %v1207 = vsel %vm1195, %v1176, %v1178
        %v1208 = vsel %vm1195, %v1180, %v1182
        %v1209 = vsel %vm1195, %v1184, %v1186
        %v1210 = vsel %vm1195, %v1188, %v1190
        %v1211 = vsel %vm1195, %v1192, %v1194
        %v1244 = vmax.f32 %v1067, %v1196
        %v1245 = vmax.f32 %v1068, %v1134
        %v1246 = vmax.f32 %v1069, %v1197
        %v1247 = vmax.f32 %v1070, %v1138
        %v1248 = vmax.f32 %v1071, %v1198
        %v1249 = vmax.f32 %v1072, %v1142
        %v1250 = vmax.f32 %v1073, %v1199
        %v1251 = vmax.f32 %v1074, %v1146
        %v1252 = vmax.f32 %v1075, %v1200
        %v1253 = vmax.f32 %v1076, %v1150
        %v1254 = vmax.f32 %v1077, %v1201
        %v1255 = vmax.f32 %v1078, %v1154
        %v1256 = vmax.f32 %v1079, %v1202
        %v1257 = vmax.f32 %v1080, %v1158
        %v1258 = vmax.f32 %v1081, %v1203
        %v1259 = vmax.f32 %v1082, %v1162
        %v1260 = vmax.f32 %v1083, %v1204
        %v1261 = vmax.f32 %v1084, %v1166
        %v1262 = vmax.f32 %v1085, %v1205
        %v1263 = vmax.f32 %v1086, %v1170
        %v1264 = vmax.f32 %v1087, %v1206
        %v1265 = vmax.f32 %v1088, %v1174
        %v1266 = vmax.f32 %v1089, %v1207
        %v1267 = vmax.f32 %v1090, %v1178
        %v1268 = vmax.f32 %v1091, %v1208
        %v1269 = vmax.f32 %v1092, %v1182
        %v1270 = vmax.f32 %v1093, %v1209
        %v1271 = vmax.f32 %v1094, %v1186
        %v1272 = vmax.f32 %v1095, %v1210
        %v1273 = vmax.f32 %v1096, %v1190
        %v1274 = vmax.f32 %v1097, %v1211
        %v1275 = vmax.f32 %v1098, %v1194
        %1308 = vrot.lane.b32.xlu0 %v1244, 127
        %v1309 = vpop.permute.xlu0 %1308
        %1310 = vrot.lane.b32.xlu0 %v1245, 127
        %v1311 = vpop.permute.xlu0 %1310
        %1312 = vrot.lane.b32.xlu0 %v1246, 127
        %v1313 = vpop.permute.xlu0 %1312
        %1314 = vrot.lane.b32.xlu0 %v1247, 127
        %v1315 = vpop.permute.xlu0 %1314
        %1316 = vrot.lane.b32.xlu0 %v1248, 127
        %v1317 = vpop.permute.xlu0 %1316
        %1318 = vrot.lane.b32.xlu0 %v1249, 127
        %v1319 = vpop.permute.xlu0 %1318
        %1320 = vrot.lane.b32.xlu0 %v1250, 127
        %v1321 = vpop.permute.xlu0 %1320
        %1322 = vrot.lane.b32.xlu0 %v1251, 127
        %v1323 = vpop.permute.xlu0 %1322
        %1324 = vrot.lane.b32.xlu0 %v1252, 127
        %v1325 = vpop.permute.xlu0 %1324
        %1326 = vrot.lane.b32.xlu0 %v1253, 127
        %v1327 = vpop.permute.xlu0 %1326
        %1328 = vrot.lane.b32.xlu0 %v1254, 127
        %v1329 = vpop.permute.xlu0 %1328
        %1330 = vrot.lane.b32.xlu0 %v1255, 127
        %v1331 = vpop.permute.xlu0 %1330
        %1332 = vrot.lane.b32.xlu0 %v1256, 127
        %v1333 = vpop.permute.xlu0 %1332
        %1334 = vrot.lane.b32.xlu0 %v1257, 127
        %v1335 = vpop.permute.xlu0 %1334
        %1336 = vrot.lane.b32.xlu0 %v1258, 127
        %v1337 = vpop.permute.xlu0 %1336
        %1338 = vrot.lane.b32.xlu0 %v1259, 127
        %v1339 = vpop.permute.xlu0 %1338
        %1340 = vrot.lane.b32.xlu0 %v1260, 127
        %v1341 = vpop.permute.xlu0 %1340
        %1342 = vrot.lane.b32.xlu0 %v1261, 127
        %v1343 = vpop.permute.xlu0 %1342
        %1344 = vrot.lane.b32.xlu0 %v1262, 127
        %v1345 = vpop.permute.xlu0 %1344
        %1346 = vrot.lane.b32.xlu0 %v1263, 127
        %v1347 = vpop.permute.xlu0 %1346
        %1348 = vrot.lane.b32.xlu0 %v1264, 127
        %v1349 = vpop.permute.xlu0 %1348
        %1350 = vrot.lane.b32.xlu0 %v1265, 127
        %v1351 = vpop.permute.xlu0 %1350
        %1352 = vrot.lane.b32.xlu0 %v1266, 127
        %v1353 = vpop.permute.xlu0 %1352
        %1354 = vrot.lane.b32.xlu0 %v1267, 127
        %v1355 = vpop.permute.xlu0 %1354
        %1356 = vrot.lane.b32.xlu0 %v1268, 127
        %v1357 = vpop.permute.xlu0 %1356
        %1358 = vrot.lane.b32.xlu0 %v1269, 127
        %v1359 = vpop.permute.xlu0 %1358
        %1360 = vrot.lane.b32.xlu0 %v1270, 127
        %v1361 = vpop.permute.xlu0 %1360
        %1362 = vrot.lane.b32.xlu0 %v1271, 127
        %v1363 = vpop.permute.xlu0 %1362
        %1364 = vrot.lane.b32.xlu0 %v1272, 127
        %v1365 = vpop.permute.xlu0 %1364
        %1366 = vrot.lane.b32.xlu0 %v1273, 127
        %v1367 = vpop.permute.xlu0 %1366
        %1368 = vrot.lane.b32.xlu0 %v1274, 127
        %v1369 = vpop.permute.xlu0 %1368
        %1370 = vrot.lane.b32.xlu0 %v1275, 127
        %v1371 = vpop.permute.xlu0 %1370
        %v1372 = vsel %vm841, %v1309, %v1311
        %v1373 = vsel %vm841, %v1313, %v1315
        %v1374 = vsel %vm841, %v1317, %v1319
        %v1375 = vsel %vm841, %v1321, %v1323
        %v1376 = vsel %vm841, %v1325, %v1327
        %v1377 = vsel %vm841, %v1329, %v1331
        %v1378 = vsel %vm841, %v1333, %v1335
        %v1379 = vsel %vm841, %v1337, %v1339
        %v1380 = vsel %vm841, %v1341, %v1343
        %v1381 = vsel %vm841, %v1345, %v1347
        %v1382 = vsel %vm841, %v1349, %v1351
        %v1383 = vsel %vm841, %v1353, %v1355
        %v1384 = vsel %vm841, %v1357, %v1359
        %v1385 = vsel %vm841, %v1361, %v1363
        %v1386 = vsel %vm841, %v1365, %v1367
        %v1387 = vsel %vm841, %v1369, %v1371
        %v1404 = vmax.f32 %v1244, %v1372
        %v1405 = vmax.f32 %v1246, %v1373
        %v1406 = vmax.f32 %v1248, %v1374
        %v1407 = vmax.f32 %v1250, %v1375
        %v1408 = vmax.f32 %v1252, %v1376
        %v1409 = vmax.f32 %v1254, %v1377
        %v1410 = vmax.f32 %v1256, %v1378
        %v1411 = vmax.f32 %v1258, %v1379
        %v1412 = vmax.f32 %v1260, %v1380
        %v1413 = vmax.f32 %v1262, %v1381
        %v1414 = vmax.f32 %v1264, %v1382
        %v1415 = vmax.f32 %v1266, %v1383
        %v1416 = vmax.f32 %v1268, %v1384
        %v1417 = vmax.f32 %v1270, %v1385
        %v1418 = vmax.f32 %v1272, %v1386
        %v1419 = vmax.f32 %v1274, %v1387
        %v1420 = vld [vmem:[%s3] sm:$0xf]
        %v1421 = vld [vmem:[%s3 + $0x4] sm:$0xf]
        %v1422 = vld [vmem:[%s3 + $0x8] sm:$0xf]
        %v1423 = vld [vmem:[%s3 + $0xc] sm:$0xf]
        %v1424 = vpack.c.bf16 %v1405, %v1404
        %v1425 = vpack.c.bf16 %v1407, %v1406
        %v1426 = vpack.c.bf16 %v1409, %v1408
        %v1427 = vpack.c.bf16 %v1411, %v1410
        %v1428 = vpack.c.bf16 %v1413, %v1412
        %v1429 = vpack.c.bf16 %v1415, %v1414
        %v1430 = vpack.c.bf16 %v1417, %v1416
        %v1431 = vpack.c.bf16 %v1419, %v1418
        %v1432 = vld [vmem:[%s4] sm:$0xff]
        %v1433 = vld [vmem:[%s4 + $0x8] sm:$0xff]
        %v1434 = vld [vmem:[%s4 + $0x10] sm:$0xff]
        %v1435 = vld [vmem:[%s4 + $0x18] sm:$0xff]
        %1437 = vset.pattern.permute.xlu0 0
        %1438 = vperm.xlu0 %1437, %v1432
        %v1439 = vpop.permute.xlu0 %1438
        %1442 = vset.pattern.permute.xlu0 0
        %1443 = vperm.xlu0 %1442, %v1433
        %v1444 = vpop.permute.xlu0 %1443
        %1447 = vset.pattern.permute.xlu0 0
        %1448 = vperm.xlu0 %1447, %v1434
        %v1449 = vpop.permute.xlu0 %1448
        %1452 = vset.pattern.permute.xlu0 0
        %1453 = vperm.xlu0 %1452, %v1435
        %v1454 = vpop.permute.xlu0 %1453
        %v1460 = vunpack.c.l.b16 %v1420
        %v1461 = vunpack.c.l.b16 %v1421
        %v1462 = vunpack.c.l.b16 %v1422
        %v1463 = vunpack.c.l.b16 %v1423
        %v1464 = vpack.c.b16 %v1461, %v1460
        %v1465 = vpack.c.b16 %v1463, %v1462
        %1468 = vmatprep.subr.bf16.mxu0 0
        %1469 = vmatpush1.bf16.msra.mxu0 %v1424
        %1470 = vmatprep.subr.bf16.mxu0 0
        %1471 = vmatpush1.bf16.msra.mxu0 %v1425
        %1472 = vmatprep.subr.bf16.mxu0 0
        %1473 = vmatpush1.bf16.msra.mxu0 %v1426
        %1474 = vmatprep.subr.bf16.mxu0 0
        %1475 = vmatpush1.bf16.msra.mxu0 %v1427
        %1476 = vmatprep.subr.bf16.mxu0 0
        %1477 = vmatpush1.bf16.msra.mxu0 %v1428
        %1478 = vmatprep.subr.bf16.mxu0 0
        %1479 = vmatpush1.bf16.msra.mxu0 %v1429
        %1480 = vmatprep.subr.bf16.mxu0 0
        %1481 = vmatpush1.bf16.msra.mxu0 %v1430
        %1482 = vmatprep.subr.bf16.mxu0 0
        %1483 = vmatpush1.bf16.msra.mxu0 %v1431
        %1484 = vmatprep.subr.bf16.mxu0 0
        %1485 = vmatpush1.bf16.msra.mxu0 0
        %1486 = vmatprep.subr.bf16.mxu0 0
        %1487 = vmatpush1.bf16.msra.mxu0 0
        %1488 = vmatprep.subr.bf16.mxu0 0
        %1489 = vmatpush1.bf16.msra.mxu0 0
        %1490 = vmatprep.subr.bf16.mxu0 0
        %1491 = vmatpush1.bf16.msra.mxu0 0
        %1492 = vmatprep.subr.bf16.mxu0 0
        %1493 = vmatpush1.bf16.msra.mxu0 0
        %1494 = vmatprep.subr.bf16.mxu0 0
        %1495 = vmatpush1.bf16.msra.mxu0 0
        %1496 = vmatprep.subr.bf16.mxu0 0
        %1497 = vmatpush1.bf16.msra.mxu0 0
        %1498 = vmatprep.subr.bf16.mxu0 0
        %1499 = vmatpush1.bf16.msra.mxu0 0
        %1500 = vmatprep.mubr.bf16.mxu0 0
        %1501 = vmatmul.mubr.bf16.gmra.mrb[0].mxu0 %v1464
        %v1502 = vpop.f32.mrb[0].mxu0
        %v1503 = vadd.f32 %v1439, %v1502
        %v1504 = vpop.f32.mrb[0].mxu0
        %v1505 = vpop.f32.mrb[0].mxu0
        %v1506 = vadd.f32 %v1444, %v1505
        %v1507 = vpop.f32.mrb[0].mxu0
        %1508 = vmatprep.mubr.bf16.mxu0 0
        %1509 = vmatmul.mubr.bf16.gmra.mrb[0].mxu0 %v1465
        %v1510 = vpop.f32.mrb[0].mxu0
        %v1511 = vadd.f32 %v1449, %v1510
        %v1512 = vpop.f32.mrb[0].mxu0
        %v1513 = vpop.f32.mrb[0].mxu0
        %v1514 = vadd.f32 %v1454, %v1513
        %v1515 = vpop.f32.mrb[0].mxu0
        %1516 = vdwg.mxu0
        %v1517 = vxor.u32 %v1503, 2147483648
        %v1518 = vxor.u32 %v1506, 2147483648
        %v1519 = vxor.u32 %v1511, 2147483648
        %v1520 = vxor.u32 %v1514, 2147483648
        %v1521 = vmul.f32 %v1517, 1.442695
        %v1522 = vpow.pop %v1521
        %v1523 = vmul.f32 %v1518, 1.442695
        %v1524 = vpow.pop %v1523
        %v1525 = vmul.f32 %v1519, 1.442695
        %v1526 = vpow.pop %v1525
        %v1527 = vmul.f32 %v1520, 1.442695
        %v1528 = vpow.pop %v1527
        %v1529 = vadd.f32 %v1522, 1.0
        %v1530 = vadd.f32 %v1524, 1.0
        %v1531 = vadd.f32 %v1526, 1.0
        %v1532 = vadd.f32 %v1528, 1.0
        %v1533 = vrcp.pop %v1529
        %v1534 = vmul.f32 1.0, %v1533
        %v1535 = vrcp.pop %v1530
        %v1536 = vmul.f32 1.0, %v1535
        %v1537 = vrcp.pop %v1531
        %v1538 = vmul.f32 1.0, %v1537
        %v1539 = vrcp.pop %v1532
        %v1540 = vmul.f32 1.0, %v1539
        %v1541 = vmul.f32 %v1503, %v1534
        %v1542 = vmul.f32 %v1506, %v1536
        %v1543 = vmul.f32 %v1511, %v1538
        %v1544 = vmul.f32 %v1514, %v1540
        %v1545 = vld [vmem:[%s5] sm:$0xf]
        %v1546 = vld [vmem:[%s5 + $0x4] sm:$0xf]
        %v1547 = vld [vmem:[%s5 + $0x8] sm:$0xf]
        %v1548 = vld [vmem:[%s5 + $0xc] sm:$0xf]
        %v1549 = vld [vmem:[%s5 + $0x10] sm:$0xf]
        %v1550 = vld [vmem:[%s5 + $0x14] sm:$0xf]
        %v1551 = vld [vmem:[%s5 + $0x18] sm:$0xf]
        %v1552 = vld [vmem:[%s5 + $0x1c] sm:$0xf]
        %v1553 = vld [vmem:[%s5 + $0x20] sm:$0xf]
        %v1554 = vld [vmem:[%s5 + $0x24] sm:$0xf]
        %v1555 = vld [vmem:[%s5 + $0x28] sm:$0xf]
        %v1556 = vld [vmem:[%s5 + $0x2c] sm:$0xf]
        %v1557 = vld [vmem:[%s5 + $0x30] sm:$0xf]
        %v1558 = vld [vmem:[%s5 + $0x34] sm:$0xf]
        %v1559 = vld [vmem:[%s5 + $0x38] sm:$0xf]
        %v1560 = vld [vmem:[%s5 + $0x3c] sm:$0xf]
        %v1561 = vpack.c.bf16 %v1542, %v1541
        %v1562 = vpack.c.bf16 %v1544, %v1543
        %v1563 = vld [vmem:[%s6] sm:$0xff]
        %v1564 = vld [vmem:[%s6 + $0x8] sm:$0xff]
        %v1565 = vld [vmem:[%s6 + $0x10] sm:$0xff]
        %v1566 = vld [vmem:[%s6 + $0x18] sm:$0xff]
        %v1567 = vld [vmem:[%s6 + $0x20] sm:$0xff]
        %v1568 = vld [vmem:[%s6 + $0x28] sm:$0xff]
        %v1569 = vld [vmem:[%s6 + $0x30] sm:$0xff]
        %v1570 = vld [vmem:[%s6 + $0x38] sm:$0xff]
        %v1571 = vld [vmem:[%s6 + $0x40] sm:$0xff]
        %v1572 = vld [vmem:[%s6 + $0x48] sm:$0xff]
        %v1573 = vld [vmem:[%s6 + $0x50] sm:$0xff]
        %v1574 = vld [vmem:[%s6 + $0x58] sm:$0xff]
        %v1575 = vld [vmem:[%s6 + $0x60] sm:$0xff]
        %v1576 = vld [vmem:[%s6 + $0x68] sm:$0xff]
        %v1577 = vld [vmem:[%s6 + $0x70] sm:$0xff]
        %v1578 = vld [vmem:[%s6 + $0x78] sm:$0xff]
        %1580 = vset.pattern.permute.xlu0 0
        %1581 = vperm.xlu0 %1580, %v1563
        %v1582 = vpop.permute.xlu0 %1581
        %1585 = vset.pattern.permute.xlu0 0
        %1586 = vperm.xlu0 %1585, %v1564
        %v1587 = vpop.permute.xlu0 %1586
        %1590 = vset.pattern.permute.xlu0 0
        %1591 = vperm.xlu0 %1590, %v1565
        %v1592 = vpop.permute.xlu0 %1591
        %1595 = vset.pattern.permute.xlu0 0
        %1596 = vperm.xlu0 %1595, %v1566
        %v1597 = vpop.permute.xlu0 %1596
        %1600 = vset.pattern.permute.xlu0 0
        %1601 = vperm.xlu0 %1600, %v1567
        %v1602 = vpop.permute.xlu0 %1601
        %1605 = vset.pattern.permute.xlu0 0
        %1606 = vperm.xlu0 %1605, %v1568
        %v1607 = vpop.permute.xlu0 %1606
        %1610 = vset.pattern.permute.xlu0 0
        %1611 = vperm.xlu0 %1610, %v1569
        %v1612 = vpop.permute.xlu0 %1611
        %1615 = vset.pattern.permute.xlu0 0
        %1616 = vperm.xlu0 %1615, %v1570
        %v1617 = vpop.permute.xlu0 %1616
        %1620 = vset.pattern.permute.xlu0 0
        %1621 = vperm.xlu0 %1620, %v1571
        %v1622 = vpop.permute.xlu0 %1621
        %1625 = vset.pattern.permute.xlu0 0
        %1626 = vperm.xlu0 %1625, %v1572
        %v1627 = vpop.permute.xlu0 %1626
        %1630 = vset.pattern.permute.xlu0 0
        %1631 = vperm.xlu0 %1630, %v1573
        %v1632 = vpop.permute.xlu0 %1631
        %1635 = vset.pattern.permute.xlu0 0
        %1636 = vperm.xlu0 %1635, %v1574
        %v1637 = vpop.permute.xlu0 %1636
        %1640 = vset.pattern.permute.xlu0 0
        %1641 = vperm.xlu0 %1640, %v1575
        %v1642 = vpop.permute.xlu0 %1641
        %1645 = vset.pattern.permute.xlu0 0
        %1646 = vperm.xlu0 %1645, %v1576
        %v1647 = vpop.permute.xlu0 %1646
        %1650 = vset.pattern.permute.xlu0 0
        %1651 = vperm.xlu0 %1650, %v1577
        %v1652 = vpop.permute.xlu0 %1651
        %1655 = vset.pattern.permute.xlu0 0
        %1656 = vperm.xlu0 %1655, %v1578
        %v1657 = vpop.permute.xlu0 %1656
        %v1675 = vunpack.c.l.b16 %v1545
        %v1676 = vunpack.c.l.b16 %v1546
        %v1677 = vunpack.c.l.b16 %v1547
        %v1678 = vunpack.c.l.b16 %v1548
        %v1679 = vunpack.c.l.b16 %v1549
        %v1680 = vunpack.c.l.b16 %v1550
        %v1681 = vunpack.c.l.b16 %v1551
        %v1682 = vunpack.c.l.b16 %v1552
        %v1683 = vunpack.c.l.b16 %v1553
        %v1684 = vunpack.c.l.b16 %v1554
        %v1685 = vunpack.c.l.b16 %v1555
        %v1686 = vunpack.c.l.b16 %v1556
        %v1687 = vunpack.c.l.b16 %v1557
        %v1688 = vunpack.c.l.b16 %v1558
        %v1689 = vunpack.c.l.b16 %v1559
        %v1690 = vunpack.c.l.b16 %v1560
        %v1691 = vpack.c.b16 %v1676, %v1675
        %v1692 = vpack.c.b16 %v1678, %v1677
        %v1693 = vpack.c.b16 %v1680, %v1679
        %v1694 = vpack.c.b16 %v1682, %v1681
        %v1695 = vpack.c.b16 %v1684, %v1683
        %v1696 = vpack.c.b16 %v1686, %v1685
        %v1697 = vpack.c.b16 %v1688, %v1687
        %v1698 = vpack.c.b16 %v1690, %v1689
        %vm1699 = vcmask 261120
        %v1701 = vsel %vm1699, %v1691, 0
        %v1704 = vsel %vm1699, %v1692, 0
        %v1707 = vsel %vm1699, %v1693, 0
        %v1710 = vsel %vm1699, %v1694, 0
        %v1713 = vsel %vm1699, %v1695, 0
        %v1716 = vsel %vm1699, %v1696, 0
        %v1719 = vsel %vm1699, %v1697, 0
        %v1722 = vsel %vm1699, %v1698, 0
        %1724 = vmatprep.subr.bf16.mxu0 0
        %1725 = vmatpush1.bf16.msra.mxu0 %v1561
        %1726 = vmatprep.subr.bf16.mxu0 0
        %1727 = vmatpush1.bf16.msra.mxu0 %v1562
        %1728 = vmatprep.subr.bf16.mxu0 0
        %1729 = vmatpush1.bf16.msra.mxu0 0
        %1730 = vmatprep.subr.bf16.mxu0 0
        %1731 = vmatpush1.bf16.msra.mxu0 0
        %1732 = vmatprep.subr.bf16.mxu0 0
        %1733 = vmatpush1.bf16.msra.mxu0 0
        %1734 = vmatprep.subr.bf16.mxu0 0
        %1735 = vmatpush1.bf16.msra.mxu0 0
        %1736 = vmatprep.subr.bf16.mxu0 0
        %1737 = vmatpush1.bf16.msra.mxu0 0
        %1738 = vmatprep.subr.bf16.mxu0 0
        %1739 = vmatpush1.bf16.msra.mxu0 0
        %1740 = vmatprep.subr.bf16.mxu0 0
        %1741 = vmatpush1.bf16.msra.mxu0 0
        %1742 = vmatprep.subr.bf16.mxu0 0
        %1743 = vmatpush1.bf16.msra.mxu0 0
        %1744 = vmatprep.subr.bf16.mxu0 0
        %1745 = vmatpush1.bf16.msra.mxu0 0
        %1746 = vmatprep.subr.bf16.mxu0 0
        %1747 = vmatpush1.bf16.msra.mxu0 0
        %1748 = vmatprep.subr.bf16.mxu0 0
        %1749 = vmatpush1.bf16.msra.mxu0 0
        %1750 = vmatprep.subr.bf16.mxu0 0
        %1751 = vmatpush1.bf16.msra.mxu0 0
        %1752 = vmatprep.subr.bf16.mxu0 0
        %1753 = vmatpush1.bf16.msra.mxu0 0
        %1754 = vmatprep.subr.bf16.mxu0 0
        %1755 = vmatpush1.bf16.msra.mxu0 0
        %1756 = vmatprep.mubr.bf16.mxu0 0
        %1757 = vmatmul.mubr.bf16.gmra.mrb[0].mxu0 %v1701
        %v1758 = vpop.f32.mrb[0].mxu0
        %v1759 = vadd.f32 %v1582, %v1758
        %v1760 = vpop.f32.mrb[0].mxu0
        %v1761 = vpop.f32.mrb[0].mxu0
        %v1762 = vadd.f32 %v1587, %v1761
        %v1763 = vpop.f32.mrb[0].mxu0
        %1764 = vmatprep.mubr.bf16.mxu0 0
        %1765 = vmatmul.mubr.bf16.gmra.mrb[0].mxu0 %v1704
        %v1766 = vpop.f32.mrb[0].mxu0
        %v1767 = vadd.f32 %v1592, %v1766
        %v1768 = vpop.f32.mrb[0].mxu0
        %v1769 = vpop.f32.mrb[0].mxu0
        %v1770 = vadd.f32 %v1597, %v1769
        %v1771 = vpop.f32.mrb[0].mxu0
        %1772 = vmatprep.mubr.bf16.mxu0 0
        %1773 = vmatmul.mubr.bf16.gmra.mrb[0].mxu0 %v1707
        %v1774 = vpop.f32.mrb[0].mxu0
        %v1775 = vadd.f32 %v1602, %v1774
        %v1776 = vpop.f32.mrb[0].mxu0
        %v1777 = vpop.f32.mrb[0].mxu0
        %v1778 = vadd.f32 %v1607, %v1777
        %v1779 = vpop.f32.mrb[0].mxu0
        %1780 = vmatprep.mubr.bf16.mxu0 0
        %1781 = vmatmul.mubr.bf16.gmra.mrb[0].mxu0 %v1710
        %v1782 = vpop.f32.mrb[0].mxu0
        %v1783 = vadd.f32 %v1612, %v1782
        %v1784 = vpop.f32.mrb[0].mxu0
        %v1785 = vpop.f32.mrb[0].mxu0
        %v1786 = vadd.f32 %v1617, %v1785
        %v1787 = vpop.f32.mrb[0].mxu0
        %1788 = vmatprep.mubr.bf16.mxu0 0
        %1789 = vmatmul.mubr.bf16.gmra.mrb[0].mxu0 %v1713
        %v1790 = vpop.f32.mrb[0].mxu0
        %v1791 = vadd.f32 %v1622, %v1790
        %v1792 = vpop.f32.mrb[0].mxu0
        %v1793 = vpop.f32.mrb[0].mxu0
        %v1794 = vadd.f32 %v1627, %v1793
        %v1795 = vpop.f32.mrb[0].mxu0
        %1796 = vmatprep.mubr.bf16.mxu0 0
        %1797 = vmatmul.mubr.bf16.gmra.mrb[0].mxu0 %v1716
        %v1798 = vpop.f32.mrb[0].mxu0
        %v1799 = vadd.f32 %v1632, %v1798
        %v1800 = vpop.f32.mrb[0].mxu0
        %v1801 = vpop.f32.mrb[0].mxu0
        %v1802 = vadd.f32 %v1637, %v1801
        %v1803 = vpop.f32.mrb[0].mxu0
        %1804 = vmatprep.mubr.bf16.mxu0 0
        %1805 = vmatmul.mubr.bf16.gmra.mrb[0].mxu0 %v1719
        %v1806 = vpop.f32.mrb[0].mxu0
        %v1807 = vadd.f32 %v1642, %v1806
        %v1808 = vpop.f32.mrb[0].mxu0
        %v1809 = vpop.f32.mrb[0].mxu0
        %v1810 = vadd.f32 %v1647, %v1809
        %v1811 = vpop.f32.mrb[0].mxu0
        %1812 = vmatprep.mubr.bf16.mxu0 0
        %1813 = vmatmul.mubr.bf16.gmra.mrb[0].mxu0 %v1722
        %v1814 = vpop.f32.mrb[0].mxu0
        %v1815 = vadd.f32 %v1652, %v1814
        %v1816 = vpop.f32.mrb[0].mxu0
        %v1817 = vpop.f32.mrb[0].mxu0
        %v1818 = vadd.f32 %v1657, %v1817
        %v1819 = vpop.f32.mrb[0].mxu0
        %1820 = vdwg.mxu0
        %v1821 = vxor.u32 %v1759, 2147483648
        %v1822 = vxor.u32 %v1762, 2147483648
        %v1823 = vxor.u32 %v1767, 2147483648
        %v1824 = vxor.u32 %v1770, 2147483648
        %v1825 = vxor.u32 %v1775, 2147483648
        %v1826 = vxor.u32 %v1778, 2147483648
        %v1827 = vxor.u32 %v1783, 2147483648
        %v1828 = vxor.u32 %v1786, 2147483648
        %v1829 = vxor.u32 %v1791, 2147483648
        %v1830 = vxor.u32 %v1794, 2147483648
        %v1831 = vxor.u32 %v1799, 2147483648
        %v1832 = vxor.u32 %v1802, 2147483648
        %v1833 = vxor.u32 %v1807, 2147483648
        %v1834 = vxor.u32 %v1810, 2147483648
        %v1835 = vxor.u32 %v1815, 2147483648
        %v1836 = vxor.u32 %v1818, 2147483648
        %v1837 = vmul.f32 %v1821, 1.442695
        %v1838 = vpow.pop %v1837
        %v1839 = vmul.f32 %v1822, 1.442695
        %v1840 = vpow.pop %v1839
        %v1841 = vmul.f32 %v1823, 1.442695
        %v1842 = vpow.pop %v1841
        %v1843 = vmul.f32 %v1824, 1.442695
        %v1844 = vpow.pop %v1843
        %v1845 = vmul.f32 %v1825, 1.442695
        %v1846 = vpow.pop %v1845
        %v1847 = vmul.f32 %v1826, 1.442695
        %v1848 = vpow.pop %v1847
        %v1849 = vmul.f32 %v1827, 1.442695
        %v1850 = vpow.pop %v1849
        %v1851 = vmul.f32 %v1828, 1.442695
        %v1852 = vpow.pop %v1851
        %v1853 = vmul.f32 %v1829, 1.442695
        %v1854 = vpow.pop %v1853
        %v1855 = vmul.f32 %v1830, 1.442695
        %v1856 = vpow.pop %v1855
        %v1857 = vmul.f32 %v1831, 1.442695
        %v1858 = vpow.pop %v1857
        %v1859 = vmul.f32 %v1832, 1.442695
        %v1860 = vpow.pop %v1859
        %v1861 = vmul.f32 %v1833, 1.442695
        %v1862 = vpow.pop %v1861
        %v1863 = vmul.f32 %v1834, 1.442695
        %v1864 = vpow.pop %v1863
        %v1865 = vmul.f32 %v1835, 1.442695
        %v1866 = vpow.pop %v1865
        %v1867 = vmul.f32 %v1836, 1.442695
        %v1868 = vpow.pop %v1867
        %v1869 = vadd.f32 %v1838, 1.0
        %v1870 = vadd.f32 %v1840, 1.0
        %v1871 = vadd.f32 %v1842, 1.0
        %v1872 = vadd.f32 %v1844, 1.0
        %v1873 = vadd.f32 %v1846, 1.0
        %v1874 = vadd.f32 %v1848, 1.0
        %v1875 = vadd.f32 %v1850, 1.0
        %v1876 = vadd.f32 %v1852, 1.0
        %v1877 = vadd.f32 %v1854, 1.0
        %v1878 = vadd.f32 %v1856, 1.0
        %v1879 = vadd.f32 %v1858, 1.0
        %v1880 = vadd.f32 %v1860, 1.0
        %v1881 = vadd.f32 %v1862, 1.0
        %v1882 = vadd.f32 %v1864, 1.0
        %v1883 = vadd.f32 %v1866, 1.0
        %v1884 = vadd.f32 %v1868, 1.0
        %v1885 = vrcp.pop %v1869
        %v1886 = vmul.f32 1.0, %v1885
        %v1887 = vrcp.pop %v1870
        %v1888 = vmul.f32 1.0, %v1887
        %v1889 = vrcp.pop %v1871
        %v1890 = vmul.f32 1.0, %v1889
        %v1891 = vrcp.pop %v1872
        %v1892 = vmul.f32 1.0, %v1891
        %v1893 = vrcp.pop %v1873
        %v1894 = vmul.f32 1.0, %v1893
        %v1895 = vrcp.pop %v1874
        %v1896 = vmul.f32 1.0, %v1895
        %v1897 = vrcp.pop %v1875
        %v1898 = vmul.f32 1.0, %v1897
        %v1899 = vrcp.pop %v1876
        %v1900 = vmul.f32 1.0, %v1899
        %v1901 = vrcp.pop %v1877
        %v1902 = vmul.f32 1.0, %v1901
        %v1903 = vrcp.pop %v1878
        %v1904 = vmul.f32 1.0, %v1903
        %v1905 = vrcp.pop %v1879
        %v1906 = vmul.f32 1.0, %v1905
        %v1907 = vrcp.pop %v1880
        %v1908 = vmul.f32 1.0, %v1907
        %v1909 = vrcp.pop %v1881
        %v1910 = vmul.f32 1.0, %v1909
        %v1911 = vrcp.pop %v1882
        %v1912 = vmul.f32 1.0, %v1911
        %v1913 = vrcp.pop %v1883
        %v1914 = vmul.f32 1.0, %v1913
        %v1915 = vrcp.pop %v1884
        %v1916 = vmul.f32 1.0, %v1915
        %v1917 = vmul.f32 %v422, %v1886
        %v1918 = vmul.f32 %v423, %v1888
        %v1919 = vmul.f32 %v424, %v1890
        %v1920 = vmul.f32 %v425, %v1892
        %v1921 = vmul.f32 %v426, %v1894
        %v1922 = vmul.f32 %v427, %v1896
        %v1923 = vmul.f32 %v428, %v1898
        %v1924 = vmul.f32 %v429, %v1900
        %v1925 = vmul.f32 %v430, %v1902
        %v1926 = vmul.f32 %v431, %v1904
        %v1927 = vmul.f32 %v432, %v1906
        %v1928 = vmul.f32 %v433, %v1908
        %v1929 = vmul.f32 %v434, %v1910
        %v1930 = vmul.f32 %v435, %v1912
        %v1931 = vmul.f32 %v436, %v1914
        %v1932 = vmul.f32 %v437, %v1916
        %1933 = vst [vmem:[%s414] sm:$0xff] %v1917
        %1934 = vst [vmem:[%s414 + $0x8] sm:$0xff] %v1918
        %1935 = vst [vmem:[%s414 + $0x10] sm:$0xff] %v1919
        %1936 = vst [vmem:[%s414 + $0x18] sm:$0xff] %v1920
        %1937 = vst [vmem:[%s414 + $0x20] sm:$0xff] %v1921
        %1938 = vst [vmem:[%s414 + $0x28] sm:$0xff] %v1922
        %1939 = vst [vmem:[%s414 + $0x30] sm:$0xff] %v1923
        %1940 = vst [vmem:[%s414 + $0x38] sm:$0xff] %v1924
        %1941 = vst [vmem:[%s414 + $0x40] sm:$0xff] %v1925
        %1942 = vst [vmem:[%s414 + $0x48] sm:$0xff] %v1926
        %1943 = vst [vmem:[%s414 + $0x50] sm:$0xff] %v1927
        %1944 = vst [vmem:[%s414 + $0x58] sm:$0xff] %v1928
        %1945 = vst [vmem:[%s414 + $0x60] sm:$0xff] %v1929
        %1946 = vst [vmem:[%s414 + $0x68] sm:$0xff] %v1930
        %1947 = vst [vmem:[%s414 + $0x70] sm:$0xff] %v1931
        %1948 = vst [vmem:[%s414 + $0x78] sm:$0xff] %v1932
        %s1949 = sand.u32 %s229, 1
        %s1950 = scalar_lea.sflag [#allocation4], %s1949
        %s1951 = sand.u32 %s229, 1
        %s1952 = smul.addr %s1951, 128
        %s1953 = scalar_lea.vmem [#allocation8], %s1952
        // Predicated region
        $region61: #{windowed_se_block_1d.1} parent=47 // pred_check
          %p1954 = pneg %p239
        $region62: #{windowed_se_block_1d.1} parent=47 // pred_check_branch
          %1956 = sbr.rel (%p1954) target = $region64
        $region63: #{windowed_se_block_1d.1} parent=47 // pred_region
          %s1958 = ssub.s32 2048, 2048
          %1959 = vsyncadd %s1950, %s1958
          %s1960 = smul.addr %s31, 32
          %s1961 = sadd.s32 %s32, %s1960
          %s1962 = smul.addr %s1961, 128
          %s1963 = scalar_lea.hbm %s7, %s1962
          %s1964 = sshll.u32 %s1953, 4
          %s1965 = int_to_ptr.vmem [resolvable:$true] %s1964
          %1970 = dma.vmem_to_hbm [thread:$0]  %s1965, 2048, %s1963, %s1950, 128, 256, 8
        $region64: #{windowed_se_block_1d.1} parent=47 // pred_fallthru
          _
      $region48: #{windowed_se_block_1d.1} parent=5 // pred_fallthru
        _
      %p1971 = scmp.le.s32.totalorder 2, %s22
      // Predicated region
      $region65: #{windowed_se_block_1d.1} parent=5 // pred_check
        %p1972 = pneg %p1971
      $region66: #{windowed_se_block_1d.1} parent=5 // pred_check_branch
        %1974 = sbr.rel (%p1972) target = $region68
      $region67: #{windowed_se_block_1d.1} parent=5 // pred_region
        %s1975 = ssub.s32 %s22, 2
        // Predicated region
        $region69: #{windowed_se_block_1d.1} parent=67 // pred_check
          %p1976 = pneg %p245
        $region70: #{windowed_se_block_1d.1} parent=67 // pred_check_branch
          %1978 = sbr.rel (%p1976) target = $region72
        $region71: #{windowed_se_block_1d.1} parent=67 // pred_region
          %s1979 = sand.u32 %s230, 1
          %s1980 = scalar_lea.sflag [#allocation4], %s1979
          %s1981 = sand.u32 %s230, 1
          %s1982 = smul.addr %s1981, 128
          %s1983 = scalar_lea.vmem [#allocation8], %s1982
          %1984 = dma.done %s1980, 2048
        $region72: #{windowed_se_block_1d.1} parent=67 // pred_fallthru
          _
      $region68: #{windowed_se_block_1d.1} parent=5 // pred_fallthru
        _
    $region6: #{windowed_se_block_1d.1} parent=1 // loop_footer
      %s26 = sadd.s32 1, %s22
    $region7: #{windowed_se_block_1d.1} parent=1 // loop_footer_branch
      %21 = sbr.rel target = $region3
    $region8: #{windowed_se_block_1d.1} parent=1 // loop_exit
      _
    %1985 = vsyncpa [#allocation3], 1
    %s1986 = scalar_lea.sflag [#allocation3], 1
    %1987 = vsyncpa %s1986, 1
    %1988 = vsyncpa [#allocation6], 1
    %s1989 = scalar_lea.sflag [#allocation6], 1
    %1990 = vsyncpa %s1989, 1
    %1991 = vsyncpa [#allocation4], 1
    %s1992 = scalar_lea.sflag [#allocation4], 1
    %1993 = vsyncpa %s1992, 1

</llo_original>
